<compile_context>
chip_gen: v7x
topology: tpu7x:2x2x1
jax: 0.10.0
libtpu: 0.0.40
codegen_flags: <defaults>
</compile_context>

<pallas_src>
import functools

import jax
import jax.numpy as jnp
from jax import lax
from jax.experimental import pallas as pl
from jax.experimental.pallas import tpu as pltpu


def _round_up(x: int, m: int) -> int:
    return ((x + m - 1) // m) * m


def _transformer_kernel(
    x_ref,                      # (Nb, T, D) f32   glove embeddings, one batch block
    wq_ref, bq_ref,             # (D, D) cdt / (1, D) f32
    wk_ref, bk_ref,
    wv_ref, bv_ref,
    wo_ref, bo_ref,
    gamma_ref, beta_ref,        # (1, D) f32
    wop_ref, bop_ref,           # (D, Tv) cdt / (1, Tv) f32   one vocab tile
    logits_ref,                 # (Nb, Tv) f32  out
    attn_ref,                   # (Nb, T, H*T) f32  out
    ln_scratch,                 # (Nb, D) f32   persists across the vocab axis
    *,
    num_heads: int,
):
    j = pl.program_id(1)        # vocab-tile index (inner, "arbitrary" grid axis)
    cdt = wq_ref.dtype          # MXU input dtype (bf16 w/ f32 accumulation)

    # Attention + LayerNorm depend only on the batch block: run once per batch
    # block (at vocab tile 0) and stash the LN'd last-token rows in VMEM.
    @pl.when(j == 0)
    def _attention_and_layernorm():
        x3 = x_ref[...]                                   # [Nb, T, D] f32
        Nb, T, D = x3.shape
        H = num_heads
        hd = D // H
        scale = 1.0 / (hd ** 0.5)

        # Q/K/V projections as single [Nb*T, D] x [D, D] MXU matmuls.
        x2 = x3.reshape(Nb * T, D).astype(cdt)
        q2 = jnp.dot(x2, wq_ref[...], preferred_element_type=jnp.float32) + bq_ref[...]
        k2 = jnp.dot(x2, wk_ref[...], preferred_element_type=jnp.float32) + bk_ref[...]
        v2 = jnp.dot(x2, wv_ref[...], preferred_element_type=jnp.float32) + bv_ref[...]
        q2 = q2 * scale                # fold 1/sqrt(hd) into q once (not per-head)
        q3 = q2.reshape(Nb, T, D).astype(cdt)
        k3 = k2.reshape(Nb, T, D).astype(cdt)
        v3 = v2.reshape(Nb, T, D).astype(cdt)

        # Batched over samples; no explicit k.T materialization.
        score_dims = (((2,), (2,)), ((0,), (0,)))   # [Nb,T,hd] x [Nb,T,hd] -> [Nb,T,T]
        ctx_dims = (((2,), (1,)), ((0,), (0,)))     # [Nb,1,T]  x [Nb,T,hd] -> [Nb,1,hd]

        ctx_parts = []
        for h in range(H):                          # H is small & static: unrolled
            sl = slice(h * hd, (h + 1) * hd)
            scores = lax.dot_general(
                q3[:, :, sl], k3[:, :, sl], dimension_numbers=score_dims,
                preferred_element_type=jnp.float32)             # [Nb, T, T]
            m = jnp.max(scores, axis=-1, keepdims=True)
            e = jnp.exp(scores - m)
            probs = e / jnp.sum(e, axis=-1, keepdims=True)      # exact softmax
            # Per-head slice store (lane-dense for realistic T >= 128).
            attn_ref[:, :, h * T:(h + 1) * T] = probs
            # Only the last query row feeds LayerNorm / the final linear.
            ctx_parts.append(lax.dot_general(
                probs[:, T - 1:T, :].astype(cdt), v3[:, :, sl],
                dimension_numbers=ctx_dims,
                preferred_element_type=jnp.float32))            # [Nb, 1, hd]

        ctx_last = jnp.concatenate(ctx_parts, axis=-1).reshape(Nb, D)   # [Nb, D]
        attn_out = jnp.dot(ctx_last.astype(cdt), wo_ref[...],
                           preferred_element_type=jnp.float32) + bo_ref[...]
        y = attn_out + x3[:, T - 1, :]              # residual, last time step only

        # LayerNorm (biased variance, eps=1e-5, like torch.nn.LayerNorm).
        mu = jnp.mean(y, axis=-1, keepdims=True)
        var = jnp.mean((y - mu) * (y - mu), axis=-1, keepdims=True)
        ln = (y - mu) * lax.rsqrt(var + 1e-5)
        ln_scratch[...] = ln * gamma_ref[...] + beta_ref[...]   # [Nb, D]

    # Final linear for this vocab tile (every (i, j) grid step).
    logits_ref[...] = (
        jnp.dot(ln_scratch[...].astype(cdt), wop_ref[...],
                preferred_element_type=jnp.float32) + bop_ref[...])


def _batch_blocking(n: int, max_block: int) -> tuple[int, int]:
    """Return (batch block Nb, padded batch Np).

    Blocks are either the full batch (tiny n) or a multiple of 8 (sublane
    aligned), chosen so the batch grid axis has >= 2 steps when possible so it
    can shard across v7x's two TensorCores."""
    max_block = max(8, _round_up(max_block, 8))
    if n <= 8:
        return n, n
    nb = min(max_block, max(8, (_round_up(n, 8) // 2) // 8 * 8))
    return nb, _round_up(n, nb)


def transformer_forward(x_tokens, params, *, num_heads, max_batch_block=16,
                        vocab_tile=2048, use_bf16_matmul=True):
    """x_tokens: [N, T] int32 ids.  Returns (out [N, V] softmax probs,
    attn [N, H, T, T]) -- same contract as the PyTorch model.forward."""
    emb = params["emb"]                              # [vocab_in, D]
    N, T = x_tokens.shape
    D = emb.shape[1]
    V = params["w_op"].shape[1]
    H = num_heads
    assert D % H == 0, "embedding_dim must be divisible by num_heads"
    assert T % 8 == 0, ("T must be a multiple of 8 (sublane) so the in-kernel "
                        "(Nb,T,D) <-> (Nb*T,D) folds are layout-trivial")

    # GloVe embedding lookup (gather) -- plain-JAX glue around the kernel.
    x_glove = jnp.take(emb, x_tokens, axis=0).astype(jnp.float32)   # [N, T, D]

    Nb, Np = _batch_blocking(N, max_batch_block)
    if Np != N:
        x_glove = jnp.pad(x_glove, ((0, Np - N), (0, 0), (0, 0)))

    # Lane-pad the vocab and tile it over the inner grid axis so W_op is never
    # resident as one giant VMEM block (padded logits are sliced off before the
    # wrapper softmax, so padded weight/bias columns can simply be zero).
    Vp = _round_up(V, 128)
    Tv = min(Vp, _round_up(vocab_tile, 128))
    Vp = _round_up(Vp, Tv)
    w_op, b_op = params["w_op"], params["b_op"]
    if Vp != V:
        w_op = jnp.pad(w_op, ((0, 0), (0, Vp - V)))
        b_op = jnp.pad(b_op, ((0, 0), (0, Vp - V)))

    cdt = jnp.bfloat16 if use_bf16_matmul else jnp.float32
    w_q = params["w_q"].astype(cdt)
    w_k = params["w_k"].astype(cdt)
    w_v = params["w_v"].astype(cdt)
    w_o = params["w_o"].astype(cdt)
    w_op = w_op.astype(cdt)
    wbytes = jnp.dtype(cdt).itemsize

    grid = (Np // Nb, Vp // Tv)

    # VMEM budget: pipelined blocks double-buffered, constant weights single
    # buffered; x2 headroom, capped at v7x's 64 MiB physical VMEM.
    est = (2 * Nb * T * D * 4                    # x block
           + 2 * Nb * T * H * T * 4              # attn slab block
           + 2 * Nb * Tv * 4                     # logits block
           + Nb * D * 4                          # ln scratch
           + 4 * D * D * wbytes + 6 * D * 4      # Wq/k/v/o + biases + gamma/beta
           + 2 * (D * Tv * wbytes + Tv * 4))     # w_op / b_op tiles
    vmem_limit = int(min(64 * 2**20, max(2 * est + (8 << 20), 16 << 20)))

    const = pl.Buffered(1)        # never re-fetched -> no double buffer
    w_spec = pl.BlockSpec((D, D), lambda i, j: (0, 0), pipeline_mode=const)
    b_spec = pl.BlockSpec((1, D), lambda i, j: (0, 0), pipeline_mode=const)

    kernel = functools.partial(_transformer_kernel, num_heads=H)

    logits_p, attn_slab = pl.pallas_call(
        kernel,
        out_shape=(
            jax.ShapeDtypeStruct((Np, Vp), jnp.float32),
            jax.ShapeDtypeStruct((Np, T, H * T), jnp.float32),
        ),
        grid_spec=pltpu.PrefetchScalarGridSpec(
            num_scalar_prefetch=0,
            grid=grid,
            in_specs=[
                pl.BlockSpec((Nb, T, D), lambda i, j: (i, 0, 0)),   # x_glove
                w_spec, b_spec,                                     # Wq, bq
                w_spec, b_spec,                                     # Wk, bk
                w_spec, b_spec,                                     # Wv, bv
                w_spec, b_spec,                                     # Wo, bo
                b_spec, b_spec,                                     # gamma, beta
                pl.BlockSpec((D, Tv), lambda i, j: (0, j)),         # W_op tile
                pl.BlockSpec((1, Tv), lambda i, j: (0, j)),         # b_op tile
            ],
            out_specs=[
                pl.BlockSpec((Nb, Tv), lambda i, j: (i, j)),            # logits
                pl.BlockSpec((Nb, T, H * T), lambda i, j: (i, 0, 0)),   # attn slab
            ],
            scratch_shapes=[pltpu.VMEM((Nb, D), jnp.float32)],
        ),
        compiler_params=pltpu.CompilerParams(
            dimension_semantics=("parallel", "arbitrary"),
            vmem_limit_bytes=vmem_limit,
        ),
    )(
        x_glove,
        w_q, params["b_q"], w_k, params["b_k"], w_v, params["b_v"],
        w_o, params["b_o"], params["ln_gamma"], params["ln_beta"],
        w_op, b_op,
    )

    # Exact final softmax over the (small) [N, V] logits in the wrapper -- this
    # keeps the kernel vocab-tileable without a flash-style running max/sum.
    out = jax.nn.softmax(logits_p[:N, :V], axis=-1)
    # [N, T, H*T] slab -> [N, H, T, T]; reshape + transpose is free XLA glue.
    attn = attn_slab[:N].reshape(N, T, H, T).transpose(0, 2, 1, 3)
    return out, attn


def _reference_forward(x_tokens, params, *, num_heads):
    """Pure-JAX (f32) re-implementation of model.forward for validation."""
    x_glove = jnp.take(params["emb"], x_tokens, axis=0).astype(jnp.float32)
    N, T, D = x_glove.shape
    H = num_heads
    hd = D // H
    x2 = x_glove.reshape(N * T, D)
    q = (x2 @ params["w_q"] + params["b_q"]).reshape(N, T, H, hd)
    k = (x2 @ params["w_k"] + params["b_k"]).reshape(N, T, H, hd)
    v = (x2 @ params["w_v"] + params["b_v"]).reshape(N, T, H, hd)
    scores = jnp.einsum("nthc,nshc->nhts", q, k) / (hd ** 0.5)
    attn = jax.nn.softmax(scores, axis=-1)                        # [N, H, T, T]
    ctx = jnp.einsum("nhts,nshc->nthc", attn, v).reshape(N, T, D)
    attn_out = (ctx.reshape(N * T, D) @ params["w_o"] + params["b_o"]).reshape(N, T, D)
    y = attn_out + x_glove
    mu = y.mean(-1, keepdims=True)
    var = ((y - mu) ** 2).mean(-1, keepdims=True)
    ln = (y - mu) * lax.rsqrt(var + 1e-5) * params["ln_gamma"] + params["ln_beta"]
    out = jax.nn.softmax(ln[:, -1, :] @ params["w_op"] + params["b_op"], axis=-1)
    return out, attn


def init_params(key, vocab_size, embedding_dim, num_heads):
    del num_heads
    D, V = embedding_dim, vocab_size
    ks = jax.random.split(key, 6)
    scale = 0.02
    return {
        "emb": scale * jax.random.normal(ks[0], (V, D), jnp.float32),
        "w_q": scale * jax.random.normal(ks[1], (D, D), jnp.float32),
        "w_k": scale * jax.random.normal(ks[2], (D, D), jnp.float32),
        "w_v": scale * jax.random.normal(ks[3], (D, D), jnp.float32),
        "w_o": scale * jax.random.normal(ks[4], (D, D), jnp.float32),
        "b_q": jnp.zeros((1, D), jnp.float32),
        "b_k": jnp.zeros((1, D), jnp.float32),
        "b_v": jnp.zeros((1, D), jnp.float32),
        "b_o": jnp.zeros((1, D), jnp.float32),
        "ln_gamma": jnp.ones((1, D), jnp.float32),
        "ln_beta": jnp.zeros((1, D), jnp.float32),
        "w_op": scale * jax.random.normal(ks[5], (D, V), jnp.float32),
        "b_op": jnp.zeros((1, V), jnp.float32),
    }


if __name__ == "__main__":
    # Small, self-consistent shapes (residual x + x_glove requires
    # embedding_dim == projection dims, as in the reference module's usage).
    N, T = 2, 8
    embedding_dim = 32
    num_heads = 4
    vocab_size = 64

    key = jax.random.PRNGKey(0)
    k_tok, k_par = jax.random.split(key)
    x_tokens = jax.random.randint(k_tok, (N, T), 0, vocab_size, dtype=jnp.int32)
    params = init_params(k_par, vocab_size, embedding_dim, num_heads)

    out_expected, attn_expected = _reference_forward(x_tokens, params,
                                                     num_heads=num_heads)

    # f32-matmul kernel run: tight check against the pure-JAX reference.
    out32, attn32 = transformer_forward(x_tokens, params, num_heads=num_heads,
                                        use_bf16_matmul=False)
    jax.block_until_ready((out32, attn32))
    assert out32.shape == (N, vocab_size)
    assert attn32.shape == (N, num_heads, T, T)
    assert bool(jnp.allclose(out32, out_expected, atol=1e-3))
    assert bool(jnp.allclose(attn32, attn_expected, atol=1e-3))

    # Default (bf16-matmul, f32-accumulate) kernel run: looser numeric check,
    # exact softmax row sums.
    out, attn = transformer_forward(x_tokens, params, num_heads=num_heads)
    jax.block_until_ready((out, attn))
    assert out.shape == (N, vocab_size)
    assert attn.shape == (N, num_heads, T, T)
    assert bool(jnp.allclose(out, out_expected, atol=1e-2))
    assert bool(jnp.allclose(attn, attn_expected, atol=1e-2))
    assert bool(jnp.allclose(jnp.sum(out, axis=-1), 1.0, atol=1e-5))
    assert bool(jnp.allclose(jnp.sum(attn, axis=-1), 1.0, atol=1e-4))

    print("KERNEL_OK")
</pallas_src>

<mosaic_0001>
module attributes {stable_mosaic.version = 11 : i64} {
  func.func @_transformer_kernel(%arg0: i32, %arg1: i32, %arg2: memref<2x8x32xf32, #tpu.memory_space<vmem>>, %arg3: memref<32x32xf32, #tpu.memory_space<vmem>>, %arg4: memref<1x32xf32, #tpu.memory_space<vmem>>, %arg5: memref<32x32xf32, #tpu.memory_space<vmem>>, %arg6: memref<1x32xf32, #tpu.memory_space<vmem>>, %arg7: memref<32x32xf32, #tpu.memory_space<vmem>>, %arg8: memref<1x32xf32, #tpu.memory_space<vmem>>, %arg9: memref<32x32xf32, #tpu.memory_space<vmem>>, %arg10: memref<1x32xf32, #tpu.memory_space<vmem>>, %arg11: memref<1x32xf32, #tpu.memory_space<vmem>>, %arg12: memref<1x32xf32, #tpu.memory_space<vmem>>, %arg13: memref<32x128xf32, #tpu.memory_space<vmem>>, %arg14: memref<1x128xf32, #tpu.memory_space<vmem>>, %arg15: memref<2x128xf32, #tpu.memory_space<vmem>>, %arg16: memref<2x8x32xf32, #tpu.memory_space<vmem>>, %arg17: memref<2x32xf32, #tpu.memory_space<vmem>>) attributes {dimension_semantics = [#tpu.dimension_semantics<parallel>, #tpu.dimension_semantics<arbitrary>], iteration_bounds = array<i64: 1, 1>, scalar_prefetch = 0 : i64, scratch_operands = 1 : i64, tpu.core_type = #tpu.core_type<tc>, window_params = [{transform_indices = @transform_0, window_bounds = array<i64: 2, 8, 32>}, {pipeline_mode = #tpu.pipeline_mode<synchronous>, transform_indices = @transform_1, window_bounds = array<i64: 32, 32>}, {pipeline_mode = #tpu.pipeline_mode<synchronous>, transform_indices = @transform_2, window_bounds = array<i64: 1, 32>}, {pipeline_mode = #tpu.pipeline_mode<synchronous>, transform_indices = @transform_3, window_bounds = array<i64: 32, 32>}, {pipeline_mode = #tpu.pipeline_mode<synchronous>, transform_indices = @transform_4, window_bounds = array<i64: 1, 32>}, {pipeline_mode = #tpu.pipeline_mode<synchronous>, transform_indices = @transform_5, window_bounds = array<i64: 32, 32>}, {pipeline_mode = #tpu.pipeline_mode<synchronous>, transform_indices = @transform_6, window_bounds = array<i64: 1, 32>}, {pipeline_mode = #tpu.pipeline_mode<synchronous>, transform_indices = @transform_7, window_bounds = array<i64: 32, 32>}, {pipeline_mode = #tpu.pipeline_mode<synchronous>, transform_indices = @transform_8, window_bounds = array<i64: 1, 32>}, {pipeline_mode = #tpu.pipeline_mode<synchronous>, transform_indices = @transform_9, window_bounds = array<i64: 1, 32>}, {pipeline_mode = #tpu.pipeline_mode<synchronous>, transform_indices = @transform_10, window_bounds = array<i64: 1, 32>}, {transform_indices = @transform_11, window_bounds = array<i64: 32, 128>}, {transform_indices = @transform_12, window_bounds = array<i64: 1, 128>}, {transform_indices = @transform_13, window_bounds = array<i64: 2, 128>}, {transform_indices = @transform_14, window_bounds = array<i64: 2, 8, 32>}]} {
    %c0_i32 = arith.constant 0 : i32
    %0 = arith.cmpi eq, %arg1, %c0_i32 : i32
    %1 = arith.extui %0 : i1 to i32
    %c0_i32_0 = arith.constant 0 : i32
    %2 = arith.cmpi ne, %1, %c0_i32_0 : i32
    scf.if %2 {
      %c0_8 = arith.constant 0 : index
      %c0_9 = arith.constant 0 : index
      %c0_10 = arith.constant 0 : index
      %10 = vector.load %arg2[%c0_8, %c0_9, %c0_10] : memref<2x8x32xf32, #tpu.memory_space<vmem>>, vector<2x8x32xf32>
      %11 = vector.shape_cast %10 : vector<2x8x32xf32> to vector<16x32xf32>
      %c0_11 = arith.constant 0 : index
      %c0_12 = arith.constant 0 : index
      %12 = vector.load %arg3[%c0_11, %c0_12] : memref<32x32xf32, #tpu.memory_space<vmem>>, vector<32x32xf32>
      %cst_13 = arith.constant dense<0.000000e+00> : vector<16x32xf32>
      %13 = tpu.matmul %11, %12, %cst_13 {dimension_numbers = #tpu.dot_dimension_numbers<[1], [0], [0], [1], [0, 0, 1, 1], [], []>} : vector<16x32xf32>, vector<32x32xf32>, vector<16x32xf32> -> vector<16x32xf32>
      %c0_14 = arith.constant 0 : index
      %c0_15 = arith.constant 0 : index
      %14 = vector.load %arg4[%c0_14, %c0_15] : memref<1x32xf32, #tpu.memory_space<vmem>>, vector<1x32xf32>
      %15 = vector.broadcast %14 : vector<1x32xf32> to vector<16x32xf32>
      %16 = arith.addf %13, %15 : vector<16x32xf32>
      %c0_16 = arith.constant 0 : index
      %c0_17 = arith.constant 0 : index
      %17 = vector.load %arg5[%c0_16, %c0_17] : memref<32x32xf32, #tpu.memory_space<vmem>>, vector<32x32xf32>
      %cst_18 = arith.constant dense<0.000000e+00> : vector<16x32xf32>
      %18 = tpu.matmul %11, %17, %cst_18 {dimension_numbers = #tpu.dot_dimension_numbers<[1], [0], [0], [1], [0, 0, 1, 1], [], []>} : vector<16x32xf32>, vector<32x32xf32>, vector<16x32xf32> -> vector<16x32xf32>
      %c0_19 = arith.constant 0 : index
      %c0_20 = arith.constant 0 : index
      %19 = vector.load %arg6[%c0_19, %c0_20] : memref<1x32xf32, #tpu.memory_space<vmem>>, vector<1x32xf32>
      %20 = vector.broadcast %19 : vector<1x32xf32> to vector<16x32xf32>
      %21 = arith.addf %18, %20 : vector<16x32xf32>
      %c0_21 = arith.constant 0 : index
      %c0_22 = arith.constant 0 : index
      %22 = vector.load %arg7[%c0_21, %c0_22] : memref<32x32xf32, #tpu.memory_space<vmem>>, vector<32x32xf32>
      %cst_23 = arith.constant dense<0.000000e+00> : vector<16x32xf32>
      %23 = tpu.matmul %11, %22, %cst_23 {dimension_numbers = #tpu.dot_dimension_numbers<[1], [0], [0], [1], [0, 0, 1, 1], [], []>} : vector<16x32xf32>, vector<32x32xf32>, vector<16x32xf32> -> vector<16x32xf32>
      %c0_24 = arith.constant 0 : index
      %c0_25 = arith.constant 0 : index
      %24 = vector.load %arg8[%c0_24, %c0_25] : memref<1x32xf32, #tpu.memory_space<vmem>>, vector<1x32xf32>
      %25 = vector.broadcast %24 : vector<1x32xf32> to vector<16x32xf32>
      %26 = arith.addf %23, %25 : vector<16x32xf32>
      %cst_26 = arith.constant 0.353553385 : f32
      %27 = vector.broadcast %cst_26 : f32 to vector<16x32xf32>
      %28 = arith.mulf %16, %27 : vector<16x32xf32>
      %29 = vector.shape_cast %28 : vector<16x32xf32> to vector<2x8x32xf32>
      %30 = vector.shape_cast %21 : vector<16x32xf32> to vector<2x8x32xf32>
      %31 = vector.shape_cast %26 : vector<16x32xf32> to vector<2x8x32xf32>
      %32 = vector.extract_strided_slice %29 {offsets = [0, 0, 0], sizes = [2, 8, 8], strides = [1, 1, 1]} : vector<2x8x32xf32> to vector<2x8x8xf32>
      %33 = vector.extract_strided_slice %30 {offsets = [0, 0, 0], sizes = [2, 8, 8], strides = [1, 1, 1]} : vector<2x8x32xf32> to vector<2x8x8xf32>
      %cst_27 = arith.constant dense<0.000000e+00> : vector<2x8x8xf32>
      %34 = tpu.matmul %32, %33, %cst_27 {dimension_numbers = #tpu.dot_dimension_numbers<[2], [2], [1], [1], [0, 0, 0, 1, 1, 1], [0], [0]>} : vector<2x8x8xf32>, vector<2x8x8xf32>, vector<2x8x8xf32> -> vector<2x8x8xf32>
      %cst_28 = arith.constant dense<0xFF800000> : vector<2x8xf32>
      %35 = vector.multi_reduction <maximumf>, %34, %cst_28 [2] : vector<2x8x8xf32> to vector<2x8xf32>
      %36 = vector.shape_cast %35 : vector<2x8xf32> to vector<2x8x1xf32>
      %37 = vector.broadcast %36 : vector<2x8x1xf32> to vector<2x8x8xf32>
      %38 = arith.subf %34, %37 : vector<2x8x8xf32>
      %39 = math.exp %38 : vector<2x8x8xf32>
      %cst_29 = arith.constant dense<0.000000e+00> : vector<2x8xf32>
      %40 = vector.multi_reduction <add>, %39, %cst_29 [2] : vector<2x8x8xf32> to vector<2x8xf32>
      %41 = vector.shape_cast %40 : vector<2x8xf32> to vector<2x8x1xf32>
      %42 = vector.broadcast %41 : vector<2x8x1xf32> to vector<2x8x8xf32>
      %43 = arith.divf %39, %42 : vector<2x8x8xf32>
      %c0_30 = arith.constant 0 : index
      %c0_31 = arith.constant 0 : index
      %c0_32 = arith.constant 0 : index
      %44 = vector.load %arg16[%c0_30, %c0_31, %c0_32] : memref<2x8x32xf32, #tpu.memory_space<vmem>>, vector<2x8x8xf32>
      tpu.vector_store %arg16[%c0_30, %c0_31, %c0_32], %43 {strides = array<i32>} : memref<2x8x32xf32, #tpu.memory_space<vmem>>, vector<2x8x8xf32>,
      %45 = vector.extract_strided_slice %43 {offsets = [0, 7, 0], sizes = [2, 1, 8], strides = [1, 1, 1]} : vector<2x8x8xf32> to vector<2x1x8xf32>
      %46 = vector.extract_strided_slice %31 {offsets = [0, 0, 0], sizes = [2, 8, 8], strides = [1, 1, 1]} : vector<2x8x32xf32> to vector<2x8x8xf32>
      %cst_33 = arith.constant dense<0.000000e+00> : vector<2x1x8xf32>
      %47 = tpu.matmul %45, %46, %cst_33 {dimension_numbers = #tpu.dot_dimension_numbers<[2], [1], [1], [2], [0, 0, 0, 1, 1, 2], [0], [0]>} : vector<2x1x8xf32>, vector<2x8x8xf32>, vector<2x1x8xf32> -> vector<2x1x8xf32>
      %48 = vector.extract_strided_slice %29 {offsets = [0, 0, 8], sizes = [2, 8, 8], strides = [1, 1, 1]} : vector<2x8x32xf32> to vector<2x8x8xf32>
      %49 = vector.extract_strided_slice %30 {offsets = [0, 0, 8], sizes = [2, 8, 8], strides = [1, 1, 1]} : vector<2x8x32xf32> to vector<2x8x8xf32>
      %cst_34 = arith.constant dense<0.000000e+00> : vector<2x8x8xf32>
      %50 = tpu.matmul %48, %49, %cst_34 {dimension_numbers = #tpu.dot_dimension_numbers<[2], [2], [1], [1], [0, 0, 0, 1, 1, 1], [0], [0]>} : vector<2x8x8xf32>, vector<2x8x8xf32>, vector<2x8x8xf32> -> vector<2x8x8xf32>
      %cst_35 = arith.constant dense<0xFF800000> : vector<2x8xf32>
      %51 = vector.multi_reduction <maximumf>, %50, %cst_35 [2] : vector<2x8x8xf32> to vector<2x8xf32>
      %52 = vector.shape_cast %51 : vector<2x8xf32> to vector<2x8x1xf32>
      %53 = vector.broadcast %52 : vector<2x8x1xf32> to vector<2x8x8xf32>
      %54 = arith.subf %50, %53 : vector<2x8x8xf32>
      %55 = math.exp %54 : vector<2x8x8xf32>
      %cst_36 = arith.constant dense<0.000000e+00> : vector<2x8xf32>
      %56 = vector.multi_reduction <add>, %55, %cst_36 [2] : vector<2x8x8xf32> to vector<2x8xf32>
      %57 = vector.shape_cast %56 : vector<2x8xf32> to vector<2x8x1xf32>
      %58 = vector.broadcast %57 : vector<2x8x1xf32> to vector<2x8x8xf32>
      %59 = arith.divf %55, %58 : vector<2x8x8xf32>
      %c0_37 = arith.constant 0 : index
      %c0_38 = arith.constant 0 : index
      %c8 = arith.constant 8 : index
      %60 = vector.load %arg16[%c0_37, %c0_38, %c8] : memref<2x8x32xf32, #tpu.memory_space<vmem>>, vector<2x8x8xf32>
      tpu.vector_store %arg16[%c0_37, %c0_38, %c8], %59 {strides = array<i32>} : memref<2x8x32xf32, #tpu.memory_space<vmem>>, vector<2x8x8xf32>,
      %61 = vector.extract_strided_slice %59 {offsets = [0, 7, 0], sizes = [2, 1, 8], strides = [1, 1, 1]} : vector<2x8x8xf32> to vector<2x1x8xf32>
      %62 = vector.extract_strided_slice %31 {offsets = [0, 0, 8], sizes = [2, 8, 8], strides = [1, 1, 1]} : vector<2x8x32xf32> to vector<2x8x8xf32>
      %cst_39 = arith.constant dense<0.000000e+00> : vector<2x1x8xf32>
      %63 = tpu.matmul %61, %62, %cst_39 {dimension_numbers = #tpu.dot_dimension_numbers<[2], [1], [1], [2], [0, 0, 0, 1, 1, 2], [0], [0]>} : vector<2x1x8xf32>, vector<2x8x8xf32>, vector<2x1x8xf32> -> vector<2x1x8xf32>
      %64 = vector.extract_strided_slice %29 {offsets = [0, 0, 16], sizes = [2, 8, 8], strides = [1, 1, 1]} : vector<2x8x32xf32> to vector<2x8x8xf32>
      %65 = vector.extract_strided_slice %30 {offsets = [0, 0, 16], sizes = [2, 8, 8], strides = [1, 1, 1]} : vector<2x8x32xf32> to vector<2x8x8xf32>
      %cst_40 = arith.constant dense<0.000000e+00> : vector<2x8x8xf32>
      %66 = tpu.matmul %64, %65, %cst_40 {dimension_numbers = #tpu.dot_dimension_numbers<[2], [2], [1], [1], [0, 0, 0, 1, 1, 1], [0], [0]>} : vector<2x8x8xf32>, vector<2x8x8xf32>, vector<2x8x8xf32> -> vector<2x8x8xf32>
      %cst_41 = arith.constant dense<0xFF800000> : vector<2x8xf32>
      %67 = vector.multi_reduction <maximumf>, %66, %cst_41 [2] : vector<2x8x8xf32> to vector<2x8xf32>
      %68 = vector.shape_cast %67 : vector<2x8xf32> to vector<2x8x1xf32>
      %69 = vector.broadcast %68 : vector<2x8x1xf32> to vector<2x8x8xf32>
      %70 = arith.subf %66, %69 : vector<2x8x8xf32>
      %71 = math.exp %70 : vector<2x8x8xf32>
      %cst_42 = arith.constant dense<0.000000e+00> : vector<2x8xf32>
      %72 = vector.multi_reduction <add>, %71, %cst_42 [2] : vector<2x8x8xf32> to vector<2x8xf32>
      %73 = vector.shape_cast %72 : vector<2x8xf32> to vector<2x8x1xf32>
      %74 = vector.broadcast %73 : vector<2x8x1xf32> to vector<2x8x8xf32>
      %75 = arith.divf %71, %74 : vector<2x8x8xf32>
      %c0_43 = arith.constant 0 : index
      %c0_44 = arith.constant 0 : index
      %c16 = arith.constant 16 : index
      %76 = vector.load %arg16[%c0_43, %c0_44, %c16] : memref<2x8x32xf32, #tpu.memory_space<vmem>>, vector<2x8x8xf32>
      tpu.vector_store %arg16[%c0_43, %c0_44, %c16], %75 {strides = array<i32>} : memref<2x8x32xf32, #tpu.memory_space<vmem>>, vector<2x8x8xf32>,
      %77 = vector.extract_strided_slice %75 {offsets = [0, 7, 0], sizes = [2, 1, 8], strides = [1, 1, 1]} : vector<2x8x8xf32> to vector<2x1x8xf32>
      %78 = vector.extract_strided_slice %31 {offsets = [0, 0, 16], sizes = [2, 8, 8], strides = [1, 1, 1]} : vector<2x8x32xf32> to vector<2x8x8xf32>
      %cst_45 = arith.constant dense<0.000000e+00> : vector<2x1x8xf32>
      %79 = tpu.matmul %77, %78, %cst_45 {dimension_numbers = #tpu.dot_dimension_numbers<[2], [1], [1], [2], [0, 0, 0, 1, 1, 2], [0], [0]>} : vector<2x1x8xf32>, vector<2x8x8xf32>, vector<2x1x8xf32> -> vector<2x1x8xf32>
      %80 = vector.extract_strided_slice %29 {offsets = [0, 0, 24], sizes = [2, 8, 8], strides = [1, 1, 1]} : vector<2x8x32xf32> to vector<2x8x8xf32>
      %81 = vector.extract_strided_slice %30 {offsets = [0, 0, 24], sizes = [2, 8, 8], strides = [1, 1, 1]} : vector<2x8x32xf32> to vector<2x8x8xf32>
      %cst_46 = arith.constant dense<0.000000e+00> : vector<2x8x8xf32>
      %82 = tpu.matmul %80, %81, %cst_46 {dimension_numbers = #tpu.dot_dimension_numbers<[2], [2], [1], [1], [0, 0, 0, 1, 1, 1], [0], [0]>} : vector<2x8x8xf32>, vector<2x8x8xf32>, vector<2x8x8xf32> -> vector<2x8x8xf32>
      %cst_47 = arith.constant dense<0xFF800000> : vector<2x8xf32>
      %83 = vector.multi_reduction <maximumf>, %82, %cst_47 [2] : vector<2x8x8xf32> to vector<2x8xf32>
      %84 = vector.shape_cast %83 : vector<2x8xf32> to vector<2x8x1xf32>
      %85 = vector.broadcast %84 : vector<2x8x1xf32> to vector<2x8x8xf32>
      %86 = arith.subf %82, %85 : vector<2x8x8xf32>
      %87 = math.exp %86 : vector<2x8x8xf32>
      %cst_48 = arith.constant dense<0.000000e+00> : vector<2x8xf32>
      %88 = vector.multi_reduction <add>, %87, %cst_48 [2] : vector<2x8x8xf32> to vector<2x8xf32>
      %89 = vector.shape_cast %88 : vector<2x8xf32> to vector<2x8x1xf32>
      %90 = vector.broadcast %89 : vector<2x8x1xf32> to vector<2x8x8xf32>
      %91 = arith.divf %87, %90 : vector<2x8x8xf32>
      %c0_49 = arith.constant 0 : index
      %c0_50 = arith.constant 0 : index
      %c24 = arith.constant 24 : index
      %92 = vector.load %arg16[%c0_49, %c0_50, %c24] : memref<2x8x32xf32, #tpu.memory_space<vmem>>, vector<2x8x8xf32>
      tpu.vector_store %arg16[%c0_49, %c0_50, %c24], %91 {strides = array<i32>} : memref<2x8x32xf32, #tpu.memory_space<vmem>>, vector<2x8x8xf32>,
      %93 = vector.extract_strided_slice %91 {offsets = [0, 7, 0], sizes = [2, 1, 8], strides = [1, 1, 1]} : vector<2x8x8xf32> to vector<2x1x8xf32>
      %94 = vector.extract_strided_slice %31 {offsets = [0, 0, 24], sizes = [2, 8, 8], strides = [1, 1, 1]} : vector<2x8x32xf32> to vector<2x8x8xf32>
      %cst_51 = arith.constant dense<0.000000e+00> : vector<2x1x8xf32>
      %95 = tpu.matmul %93, %94, %cst_51 {dimension_numbers = #tpu.dot_dimension_numbers<[2], [1], [1], [2], [0, 0, 0, 1, 1, 2], [0], [0]>} : vector<2x1x8xf32>, vector<2x8x8xf32>, vector<2x1x8xf32> -> vector<2x1x8xf32>
      %96 = tpu.concatenate %47, %63, %79, %95 in 2 : vector<2x1x8xf32>, vector<2x1x8xf32>, vector<2x1x8xf32>, vector<2x1x8xf32> -> vector<2x1x32xf32>
      %97 = vector.shape_cast %96 : vector<2x1x32xf32> to vector<2x32xf32>
      %c0_52 = arith.constant 0 : index
      %c0_53 = arith.constant 0 : index
      %98 = vector.load %arg9[%c0_52, %c0_53] : memref<32x32xf32, #tpu.memory_space<vmem>>, vector<32x32xf32>
      %cst_54 = arith.constant dense<0.000000e+00> : vector<2x32xf32>
      %99 = tpu.matmul %97, %98, %cst_54 {dimension_numbers = #tpu.dot_dimension_numbers<[1], [0], [0], [1], [0, 0, 1, 1], [], []>} : vector<2x32xf32>, vector<32x32xf32>, vector<2x32xf32> -> vector<2x32xf32>
      %c0_55 = arith.constant 0 : index
      %c0_56 = arith.constant 0 : index
      %100 = vector.load %arg10[%c0_55, %c0_56] : memref<1x32xf32, #tpu.memory_space<vmem>>, vector<1x32xf32>
      %101 = vector.broadcast %100 : vector<1x32xf32> to vector<2x32xf32>
      %102 = arith.addf %99, %101 : vector<2x32xf32>
      %103 = vector.extract_strided_slice %10 {offsets = [0, 7, 0], sizes = [2, 1, 32], strides = [1, 1, 1]} : vector<2x8x32xf32> to vector<2x1x32xf32>
      %104 = vector.shape_cast %103 : vector<2x1x32xf32> to vector<2x32xf32>
      %105 = arith.addf %102, %104 : vector<2x32xf32>
      %cst_57 = arith.constant dense<0.000000e+00> : vector<2xf32>
      %106 = vector.multi_reduction <add>, %105, %cst_57 [1] : vector<2x32xf32> to vector<2xf32>
      %107 = vector.shape_cast %106 : vector<2xf32> to vector<2x1xf32>
      %cst_58 = arith.constant 3.200000e+01 : f32
      %108 = vector.broadcast %cst_58 : f32 to vector<2x1xf32>
      %109 = arith.divf %107, %108 : vector<2x1xf32>
      %110 = vector.broadcast %109 : vector<2x1xf32> to vector<2x32xf32>
      %111 = arith.subf %105, %110 : vector<2x32xf32>
      %112 = vector.broadcast %109 : vector<2x1xf32> to vector<2x32xf32>
      %113 = arith.subf %105, %112 : vector<2x32xf32>
      %114 = arith.mulf %111, %113 : vector<2x32xf32>
      %cst_59 = arith.constant dense<0.000000e+00> : vector<2xf32>
      %115 = vector.multi_reduction <add>, %114, %cst_59 [1] : vector<2x32xf32> to vector<2xf32>
      %116 = vector.shape_cast %115 : vector<2xf32> to vector<2x1xf32>
      %cst_60 = arith.constant 3.200000e+01 : f32
      %117 = vector.broadcast %cst_60 : f32 to vector<2x1xf32>
      %118 = arith.divf %116, %117 : vector<2x1xf32>
      %119 = vector.broadcast %109 : vector<2x1xf32> to vector<2x32xf32>
      %120 = arith.subf %105, %119 : vector<2x32xf32>
      %cst_61 = arith.constant 9.99999974E-6 : f32
      %121 = vector.broadcast %cst_61 : f32 to vector<2x1xf32>
      %122 = arith.addf %118, %121 : vector<2x1xf32>
      %123 = math.rsqrt %122 : vector<2x1xf32>
      %124 = vector.broadcast %123 : vector<2x1xf32> to vector<2x32xf32>
      %125 = arith.mulf %120, %124 : vector<2x32xf32>
      %c0_62 = arith.constant 0 : index
      %c0_63 = arith.constant 0 : index
      %126 = vector.load %arg11[%c0_62, %c0_63] : memref<1x32xf32, #tpu.memory_space<vmem>>, vector<1x32xf32>
      %127 = vector.broadcast %126 : vector<1x32xf32> to vector<2x32xf32>
      %128 = arith.mulf %125, %127 : vector<2x32xf32>
      %c0_64 = arith.constant 0 : index
      %c0_65 = arith.constant 0 : index
      %129 = vector.load %arg12[%c0_64, %c0_65] : memref<1x32xf32, #tpu.memory_space<vmem>>, vector<1x32xf32>
      %130 = vector.broadcast %129 : vector<1x32xf32> to vector<2x32xf32>
      %131 = arith.addf %128, %130 : vector<2x32xf32>
      %c0_66 = arith.constant 0 : index
      %c0_67 = arith.constant 0 : index
      %132 = vector.load %arg17[%c0_66, %c0_67] : memref<2x32xf32, #tpu.memory_space<vmem>>, vector<2x32xf32>
      tpu.vector_store %arg17[%c0_66, %c0_67], %131 {strides = array<i32>} : memref<2x32xf32, #tpu.memory_space<vmem>>, vector<2x32xf32>,
    } else {
    }
    %c0 = arith.constant 0 : index
    %c0_1 = arith.constant 0 : index
    %3 = vector.load %arg17[%c0, %c0_1] : memref<2x32xf32, #tpu.memory_space<vmem>>, vector<2x32xf32>
    %c0_2 = arith.constant 0 : index
    %c0_3 = arith.constant 0 : index
    %4 = vector.load %arg13[%c0_2, %c0_3] : memref<32x128xf32, #tpu.memory_space<vmem>>, vector<32x128xf32>
    %cst = arith.constant dense<0.000000e+00> : vector<2x128xf32>
    %5 = tpu.matmul %3, %4, %cst {dimension_numbers = #tpu.dot_dimension_numbers<[1], [0], [0], [1], [0, 0, 1, 1], [], []>} : vector<2x32xf32>, vector<32x128xf32>, vector<2x128xf32> -> vector<2x128xf32>
    %c0_4 = arith.constant 0 : index
    %c0_5 = arith.constant 0 : index
    %6 = vector.load %arg14[%c0_4, %c0_5] : memref<1x128xf32, #tpu.memory_space<vmem>>, vector<1x128xf32>
    %7 = vector.broadcast %6 : vector<1x128xf32> to vector<2x128xf32>
    %8 = arith.addf %5, %7 : vector<2x128xf32>
    %c0_6 = arith.constant 0 : index
    %c0_7 = arith.constant 0 : index
    %9 = vector.load %arg15[%c0_6, %c0_7] : memref<2x128xf32, #tpu.memory_space<vmem>>, vector<2x128xf32>
    tpu.vector_store %arg15[%c0_6, %c0_7], %8 {strides = array<i32>} : memref<2x128xf32, #tpu.memory_space<vmem>>, vector<2x128xf32>,
    return
  }
  func.func @transform_0(%arg0: i32, %arg1: i32) -> (i32, i32, i32) {
    %c0_i32 = arith.constant 0 : i32
    %c0_i32_0 = arith.constant 0 : i32
    %c0_i32_1 = arith.constant 0 : i32
    return %arg0, %c0_i32, %c0_i32_0 : i32, i32, i32
  }
  func.func @transform_1(%arg0: i32, %arg1: i32) -> (i32, i32) {
    %c0_i32 = arith.constant 0 : i32
    %c0_i32_0 = arith.constant 0 : i32
    %c0_i32_1 = arith.constant 0 : i32
    return %c0_i32, %c0_i32_0 : i32, i32
  }
  func.func @transform_2(%arg0: i32, %arg1: i32) -> (i32, i32) {
    %c0_i32 = arith.constant 0 : i32
    %c0_i32_0 = arith.constant 0 : i32
    %c0_i32_1 = arith.constant 0 : i32
    return %c0_i32, %c0_i32_0 : i32, i32
  }
  func.func @transform_3(%arg0: i32, %arg1: i32) -> (i32, i32) {
    %c0_i32 = arith.constant 0 : i32
    %c0_i32_0 = arith.constant 0 : i32
    %c0_i32_1 = arith.constant 0 : i32
    return %c0_i32, %c0_i32_0 : i32, i32
  }
  func.func @transform_4(%arg0: i32, %arg1: i32) -> (i32, i32) {
    %c0_i32 = arith.constant 0 : i32
    %c0_i32_0 = arith.constant 0 : i32
    %c0_i32_1 = arith.constant 0 : i32
    return %c0_i32, %c0_i32_0 : i32, i32
  }
  func.func @transform_5(%arg0: i32, %arg1: i32) -> (i32, i32) {
    %c0_i32 = arith.constant 0 : i32
    %c0_i32_0 = arith.constant 0 : i32
    %c0_i32_1 = arith.constant 0 : i32
    return %c0_i32, %c0_i32_0 : i32, i32
  }
  func.func @transform_6(%arg0: i32, %arg1: i32) -> (i32, i32) {
    %c0_i32 = arith.constant 0 : i32
    %c0_i32_0 = arith.constant 0 : i32
    %c0_i32_1 = arith.constant 0 : i32
    return %c0_i32, %c0_i32_0 : i32, i32
  }
  func.func @transform_7(%arg0: i32, %arg1: i32) -> (i32, i32) {
    %c0_i32 = arith.constant 0 : i32
    %c0_i32_0 = arith.constant 0 : i32
    %c0_i32_1 = arith.constant 0 : i32
    return %c0_i32, %c0_i32_0 : i32, i32
  }
  func.func @transform_8(%arg0: i32, %arg1: i32) -> (i32, i32) {
    %c0_i32 = arith.constant 0 : i32
    %c0_i32_0 = arith.constant 0 : i32
    %c0_i32_1 = arith.constant 0 : i32
    return %c0_i32, %c0_i32_0 : i32, i32
  }
  func.func @transform_9(%arg0: i32, %arg1: i32) -> (i32, i32) {
    %c0_i32 = arith.constant 0 : i32
    %c0_i32_0 = arith.constant 0 : i32
    %c0_i32_1 = arith.constant 0 : i32
    return %c0_i32, %c0_i32_0 : i32, i32
  }
  func.func @transform_10(%arg0: i32, %arg1: i32) -> (i32, i32) {
    %c0_i32 = arith.constant 0 : i32
    %c0_i32_0 = arith.constant 0 : i32
    %c0_i32_1 = arith.constant 0 : i32
    return %c0_i32, %c0_i32_0 : i32, i32
  }
  func.func @transform_11(%arg0: i32, %arg1: i32) -> (i32, i32) {
    %c0_i32 = arith.constant 0 : i32
    %c0_i32_0 = arith.constant 0 : i32
    return %c0_i32, %arg1 : i32, i32
  }
  func.func @transform_12(%arg0: i32, %arg1: i32) -> (i32, i32) {
    %c0_i32 = arith.constant 0 : i32
    %c0_i32_0 = arith.constant 0 : i32
    return %c0_i32, %arg1 : i32, i32
  }
  func.func @transform_13(%arg0: i32, %arg1: i32) -> (i32, i32) {
    %c0_i32 = arith.constant 0 : i32
    return %arg0, %arg1 : i32, i32
  }
  func.func @transform_14(%arg0: i32, %arg1: i32) -> (i32, i32, i32) {
    %c0_i32 = arith.constant 0 : i32
    %c0_i32_0 = arith.constant 0 : i32
    %c0_i32_1 = arith.constant 0 : i32
    return %arg0, %c0_i32, %c0_i32_0 : i32, i32, i32
  }
}

</mosaic_0001>

<llo_original>
// kernel: tpu_custom_call.1
$region0: #{tpu_custom_call.1}
  #allocation0 [shape = 'u32[]', space=smem, size = 0x4, offset = 0x4, fixed_abs, tag = 'smem constant byte address 0x4 - core index']
  #allocation1 [shape = 'u32[144,128]{1,0:T(1,128)}', space=vmem, size = 0x12000, scoped, tag = 'internal scratch']
  #allocation2 [shape = 'f32[2,32]{1,0:T(2,128)}', space=vmem, size = 0x400, scoped, tag = 'scratch operand']
  %s0 = inlined_call_operand.hbm [shape: f32[2,8,32], index: 0, kind: input, shape index: {}]
  %s1 = inlined_call_operand.hbm [shape: f32[32,32], index: 1, kind: input, shape index: {}]
  %s2 = inlined_call_operand.vmem [shape: f32[1,32], index: 2, kind: input, shape index: {}]
  %s3 = inlined_call_operand.hbm [shape: f32[32,32], index: 3, kind: input, shape index: {}]
  %s4 = inlined_call_operand.vmem [shape: f32[1,32], index: 4, kind: input, shape index: {}]
  %s5 = inlined_call_operand.hbm [shape: f32[32,32], index: 5, kind: input, shape index: {}]
  %s6 = inlined_call_operand.vmem [shape: f32[1,32], index: 6, kind: input, shape index: {}]
  %s7 = inlined_call_operand.hbm [shape: f32[32,32], index: 7, kind: input, shape index: {}]
  %s8 = inlined_call_operand.vmem [shape: f32[1,32], index: 8, kind: input, shape index: {}]
  %s9 = inlined_call_operand.vmem [shape: f32[1,32], index: 9, kind: input, shape index: {}]
  %s10 = inlined_call_operand.vmem [shape: f32[1,32], index: 10, kind: input, shape index: {}]
  %s11 = inlined_call_operand.vmem [shape: f32[32,128], index: 11, kind: input, shape index: {}]
  %s12 = inlined_call_operand.vmem [shape: f32[1,128], index: 12, kind: input, shape index: {}]
  %s13 = inlined_call_operand.hbm [shape: f32[2,128], index: 13, kind: output, shape index: {0}]
  %s14 = inlined_call_operand.hbm [shape: f32[2,8,32], index: 14, kind: output, shape index: {1}]
  %15 = xla_tuple %s13, %s14
  %s16 = sld [smem:[#allocation0]]
  $region94: #{tpu_custom_call.1} parent=0
    _
  %s18 = ssub.s32 1, %s16
  %s19 = scalar_select 0, %s18, %s16
  $region1: #{tpu_custom_call.1} parent=0
    #allocation3 [shape = 'u8[8192]{0}', space=vmem, size = 0x2000, scoped, tag = 'input window, operand 0, single buffered']
    #allocation4 [shape = 's32[1]{0}', space=sflag, size = 0x4, scoped, tag = 'scoped memory for tpu_custom_call.1']
    #allocation5 [shape = 's32[1]{0}', space=sflag, size = 0x4, scoped, tag = 'scoped memory for tpu_custom_call.1']
    #allocation6 [shape = 'u8[16384]{0}', space=vmem, size = 0x4000, scoped, tag = 'input window, operand 1, single buffered']
    #allocation7 [shape = 's32[1]{0}', space=sflag, size = 0x4, scoped, tag = 'scoped memory for tpu_custom_call.1']
    #allocation8 [shape = 'u8[16384]{0}', space=vmem, size = 0x4000, scoped, tag = 'input window, operand 3, single buffered']
    #allocation9 [shape = 'u8[16384]{0}', space=vmem, size = 0x4000, scoped, tag = 'input window, operand 5, single buffered']
    #allocation10 [shape = 's32[1]{0}', space=sflag, size = 0x4, scoped, tag = 'scoped memory for tpu_custom_call.1']
    #allocation11 [shape = 'u8[16384]{0}', space=vmem, size = 0x4000, scoped, tag = 'input window, operand 7, single buffered']
    #allocation12 [shape = 'u8[1024]{0}', space=vmem, size = 0x400, scoped, tag = 'output window, operand 0, single buffered']
    #allocation13 [shape = 'u8[8192]{0}', space=vmem, size = 0x2000, scoped, tag = 'output window, operand 1, single buffered']
    #allocation14 [shape = 's32[1]{0}', space=sflag, size = 0x4, scoped, tag = 'scoped memory for tpu_custom_call.1']
    %20 = vsyncpa [#allocation4], 0
    %21 = vsyncpa [#allocation7], 0
    %22 = vsyncpa [#allocation10], 0
    %23 = vsyncpa [#allocation5], 0
    %24 = vsyncpa [#allocation14], 0
    // Predicated region
    $region2: #{tpu_custom_call.1} parent=1 // pred_check
      _
    $region3: #{tpu_custom_call.1} parent=1 // pred_check_branch
      %26 = sbr.rel (0) target = $region5
    $region4: #{tpu_custom_call.1} parent=1 // pred_region
      %s28 = ssub.s32 256, 256
      %29 = vsyncadd [#allocation4], %s28
      %s30 = sshll.u32 [#allocation3], 4
      %s31 = int_to_ptr.vmem [resolvable:$true] %s30
      %36 = dma.hbm_to_vmem [thread:$0]  %s0, 256, %s31, [#allocation4], 128, 128, 8
    $region5: #{tpu_custom_call.1} parent=1 // pred_fallthru
      _
    // Predicated region
    $region6: #{tpu_custom_call.1} parent=1 // pred_check
      _
    $region7: #{tpu_custom_call.1} parent=1 // pred_check_branch
      %38 = sbr.rel (0) target = $region9
    $region8: #{tpu_custom_call.1} parent=1 // pred_region
      %s40 = ssub.s32 512, 512
      %41 = vsyncadd [#allocation7], %s40
      %s42 = sshll.u32 [#allocation6], 4
      %s43 = int_to_ptr.vmem [resolvable:$true] %s42
      %48 = dma.hbm_to_vmem [thread:$0]  %s1, 512, %s43, [#allocation7], 128, 128, 8
    $region9: #{tpu_custom_call.1} parent=1 // pred_fallthru
      _
    // Predicated region
    $region10: #{tpu_custom_call.1} parent=1 // pred_check
      _
    $region11: #{tpu_custom_call.1} parent=1 // pred_check_branch
      %50 = sbr.rel (0) target = $region13
    $region12: #{tpu_custom_call.1} parent=1 // pred_region
      _
    $region13: #{tpu_custom_call.1} parent=1 // pred_fallthru
      _
    // Predicated region
    $region14: #{tpu_custom_call.1} parent=1 // pred_check
      _
    $region15: #{tpu_custom_call.1} parent=1 // pred_check_branch
      %52 = sbr.rel (0) target = $region17
    $region16: #{tpu_custom_call.1} parent=1 // pred_region
      %s54 = ssub.s32 512, 512
      %55 = vsyncadd [#allocation7], %s54
      %s56 = sshll.u32 [#allocation8], 4
      %s57 = int_to_ptr.vmem [resolvable:$true] %s56
      %62 = dma.hbm_to_vmem [thread:$0]  %s3, 512, %s57, [#allocation7], 128, 128, 8
    $region17: #{tpu_custom_call.1} parent=1 // pred_fallthru
      _
    // Predicated region
    $region18: #{tpu_custom_call.1} parent=1 // pred_check
      _
    $region19: #{tpu_custom_call.1} parent=1 // pred_check_branch
      %64 = sbr.rel (0) target = $region21
    $region20: #{tpu_custom_call.1} parent=1 // pred_region
      _
    $region21: #{tpu_custom_call.1} parent=1 // pred_fallthru
      _
    // Predicated region
    $region22: #{tpu_custom_call.1} parent=1 // pred_check
      _
    $region23: #{tpu_custom_call.1} parent=1 // pred_check_branch
      %66 = sbr.rel (0) target = $region25
    $region24: #{tpu_custom_call.1} parent=1 // pred_region
      %s68 = ssub.s32 512, 512
      %69 = vsyncadd [#allocation10], %s68
      %s70 = sshll.u32 [#allocation9], 4
      %s71 = int_to_ptr.vmem [resolvable:$true] %s70
      %76 = dma.hbm_to_vmem [thread:$0]  %s5, 512, %s71, [#allocation10], 128, 128, 8
    $region25: #{tpu_custom_call.1} parent=1 // pred_fallthru
      _
    // Predicated region
    $region26: #{tpu_custom_call.1} parent=1 // pred_check
      _
    $region27: #{tpu_custom_call.1} parent=1 // pred_check_branch
      %78 = sbr.rel (0) target = $region29
    $region28: #{tpu_custom_call.1} parent=1 // pred_region
      _
    $region29: #{tpu_custom_call.1} parent=1 // pred_fallthru
      _
    // Predicated region
    $region30: #{tpu_custom_call.1} parent=1 // pred_check
      _
    $region31: #{tpu_custom_call.1} parent=1 // pred_check_branch
      %80 = sbr.rel (0) target = $region33
    $region32: #{tpu_custom_call.1} parent=1 // pred_region
      %s82 = ssub.s32 512, 512
      %83 = vsyncadd [#allocation10], %s82
      %s84 = sshll.u32 [#allocation11], 4
      %s85 = int_to_ptr.vmem [resolvable:$true] %s84
      %90 = dma.hbm_to_vmem [thread:$0]  %s7, 512, %s85, [#allocation10], 128, 128, 8
    $region33: #{tpu_custom_call.1} parent=1 // pred_fallthru
      _
    // Predicated region
    $region34: #{tpu_custom_call.1} parent=1 // pred_check
      _
    $region35: #{tpu_custom_call.1} parent=1 // pred_check_branch
      %92 = sbr.rel (0) target = $region37
    $region36: #{tpu_custom_call.1} parent=1 // pred_region
      _
    $region37: #{tpu_custom_call.1} parent=1 // pred_fallthru
      _
    // Predicated region
    $region38: #{tpu_custom_call.1} parent=1 // pred_check
      _
    $region39: #{tpu_custom_call.1} parent=1 // pred_check_branch
      %94 = sbr.rel (0) target = $region41
    $region40: #{tpu_custom_call.1} parent=1 // pred_region
      _
    $region41: #{tpu_custom_call.1} parent=1 // pred_fallthru
      _
    // Predicated region
    $region42: #{tpu_custom_call.1} parent=1 // pred_check
      _
    $region43: #{tpu_custom_call.1} parent=1 // pred_check_branch
      %96 = sbr.rel (0) target = $region45
    $region44: #{tpu_custom_call.1} parent=1 // pred_region
      _
    $region45: #{tpu_custom_call.1} parent=1 // pred_fallthru
      _
    // Predicated region
    $region46: #{tpu_custom_call.1} parent=1 // pred_check
      _
    $region47: #{tpu_custom_call.1} parent=1 // pred_check_branch
      %98 = sbr.rel (0) target = $region49
    $region48: #{tpu_custom_call.1} parent=1 // pred_region
      _
    $region49: #{tpu_custom_call.1} parent=1 // pred_fallthru
      _
    // Predicated region
    $region50: #{tpu_custom_call.1} parent=1 // pred_check
      _
    $region51: #{tpu_custom_call.1} parent=1 // pred_check_branch
      %100 = sbr.rel (0) target = $region53
    $region52: #{tpu_custom_call.1} parent=1 // pred_region
      _
    $region53: #{tpu_custom_call.1} parent=1 // pred_fallthru
      _
    // Predicated region
    $region54: #{tpu_custom_call.1} parent=1 // pred_check
      _
    $region55: #{tpu_custom_call.1} parent=1 // pred_check_branch
      %102 = sbr.rel (0) target = $region57
    $region56: #{tpu_custom_call.1} parent=1 // pred_region
      %103 = dma.done [#allocation4], 256
    $region57: #{tpu_custom_call.1} parent=1 // pred_fallthru
      _
    // Predicated region
    $region58: #{tpu_custom_call.1} parent=1 // pred_check
      _
    $region59: #{tpu_custom_call.1} parent=1 // pred_check_branch
      %105 = sbr.rel (0) target = $region61
    $region60: #{tpu_custom_call.1} parent=1 // pred_region
      %106 = dma.done [#allocation7], 512
    $region61: #{tpu_custom_call.1} parent=1 // pred_fallthru
      _
    // Predicated region
    $region62: #{tpu_custom_call.1} parent=1 // pred_check
      _
    $region63: #{tpu_custom_call.1} parent=1 // pred_check_branch
      %108 = sbr.rel (0) target = $region65
    $region64: #{tpu_custom_call.1} parent=1 // pred_region
      %109 = dma.done [#allocation7], 512
    $region65: #{tpu_custom_call.1} parent=1 // pred_fallthru
      _
    // Predicated region
    $region66: #{tpu_custom_call.1} parent=1 // pred_check
      _
    $region67: #{tpu_custom_call.1} parent=1 // pred_check_branch
      %111 = sbr.rel (0) target = $region69
    $region68: #{tpu_custom_call.1} parent=1 // pred_region
      %112 = dma.done [#allocation10], 512
    $region69: #{tpu_custom_call.1} parent=1 // pred_fallthru
      _
    // Predicated region
    $region70: #{tpu_custom_call.1} parent=1 // pred_check
      _
    $region71: #{tpu_custom_call.1} parent=1 // pred_check_branch
      %114 = sbr.rel (0) target = $region73
    $region72: #{tpu_custom_call.1} parent=1 // pred_region
      %115 = dma.done [#allocation10], 512
    $region73: #{tpu_custom_call.1} parent=1 // pred_fallthru
      _
    %p116 = scmp.eq.s32.totalorder 0, 0
    // Predicated region
    $region74: #{tpu_custom_call.1} parent=1 // pred_check
      %p117 = pneg %p116
    $region75: #{tpu_custom_call.1} parent=1 // pred_check_branch
      %119 = sbr.rel (%p117) target = $region77
    $region76: #{tpu_custom_call.1} parent=1 // pred_region
      %v120 = vld [vmem:[#allocation3] sm:$0xff]
      %v121 = vld [vmem:[#allocation3 + $0x8] sm:$0xff]
      %v122 = vld [vmem:[#allocation6] sm:$0xff]
      %v123 = vld [vmem:[#allocation6 + $0x8] sm:$0xff]
      %v124 = vld [vmem:[#allocation6 + $0x10] sm:$0xff]
      %v125 = vld [vmem:[#allocation6 + $0x18] sm:$0xff]
      %v126 = vld [vmem:[%s2] sm:$0x1]
      %v128 = vlaneseq
      %v129 = vshrl.u32 %v128, 7
      %v130 = vsub.s32 0, %v129
      %v131 = vrot.slane %v126, %v130
      %vm133 = vcmask 261120
      %v135 = vsel %vm133, %v120, 0
      %v138 = vsel %vm133, %v121, 0
      %140 = vmatprep.subr.mxu0 0.0
      %141 = vmatpush1.msra.mxu0 %v122
      %142 = vmatprep.subr.mxu0 0.0
      %143 = vmatpush1.msra.mxu0 %v123
      %144 = vmatprep.subr.mxu0 0.0
      %145 = vmatpush1.msra.mxu0 %v124
      %146 = vmatprep.subr.mxu0 0.0
      %147 = vmatpush1.msra.mxu0 %v125
      %148 = vmatprep.subr.mxu0 0.0
      %149 = vmatpush1.msra.mxu0 0.0
      %150 = vmatprep.subr.mxu0 0.0
      %151 = vmatpush1.msra.mxu0 0.0
      %152 = vmatprep.subr.mxu0 0.0
      %153 = vmatpush1.msra.mxu0 0.0
      %154 = vmatprep.subr.mxu0 0.0
      %155 = vmatpush1.msra.mxu0 0.0
      %156 = vmatprep.subr.mxu0 0.0
      %157 = vmatpush1.msra.mxu0 0.0
      %158 = vmatprep.subr.mxu0 0.0
      %159 = vmatpush1.msra.mxu0 0.0
      %160 = vmatprep.subr.mxu0 0.0
      %161 = vmatpush1.msra.mxu0 0.0
      %162 = vmatprep.subr.mxu0 0.0
      %163 = vmatpush1.msra.mxu0 0.0
      %164 = vmatprep.subr.mxu0 0.0
      %165 = vmatpush1.msra.mxu0 0.0
      %166 = vmatprep.subr.mxu0 0.0
      %167 = vmatpush1.msra.mxu0 0.0
      %168 = vmatprep.subr.mxu0 0.0
      %169 = vmatpush1.msra.mxu0 0.0
      %170 = vmatprep.subr.mxu0 0.0
      %171 = vmatpush1.msra.mxu0 0.0
      %172 = vmatprep.subr.mxu0 0.0
      %173 = vmatpush1.msra.mxu0 0.0
      %174 = vmatprep.subr.mxu0 0.0
      %175 = vmatpush1.msra.mxu0 0.0
      %176 = vmatprep.subr.mxu0 0.0
      %177 = vmatpush1.msra.mxu0 0.0
      %178 = vmatprep.subr.mxu0 0.0
      %179 = vmatpush1.msra.mxu0 0.0
      %180 = vmatprep.subr.mxu0 0.0
      %181 = vmatpush1.msra.mxu0 0.0
      %182 = vmatprep.subr.mxu0 0.0
      %183 = vmatpush1.msra.mxu0 0.0
      %184 = vmatprep.subr.mxu0 0.0
      %185 = vmatpush1.msra.mxu0 0.0
      %186 = vmatprep.subr.mxu0 0.0
      %187 = vmatpush1.msra.mxu0 0.0
      %188 = vmatprep.subr.mxu0 0.0
      %189 = vmatpush1.msra.mxu0 0.0
      %190 = vmatprep.subr.mxu0 0.0
      %191 = vmatpush1.msra.mxu0 0.0
      %192 = vmatprep.subr.mxu0 0.0
      %193 = vmatpush1.msra.mxu0 0.0
      %194 = vmatprep.subr.mxu0 0.0
      %195 = vmatpush1.msra.mxu0 0.0
      %196 = vmatprep.subr.mxu0 0.0
      %197 = vmatpush1.msra.mxu0 0.0
      %198 = vmatprep.subr.mxu0 0.0
      %199 = vmatpush1.msra.mxu0 0.0
      %200 = vmatprep.subr.mxu0 0.0
      %201 = vmatpush1.msra.mxu0 0.0
      %202 = vmatprep.subr.mxu0 0.0
      %203 = vmatpush1.msra.mxu0 0.0
      %204 = vmatprep.mubr.f32.mxu0 0.0
      %205 = vmatmul.mubr.f32.gmra.mrb[0].mxu0 %v135
      %v206 = vpop.f32.mrb[0].mxu0
      %v207 = vadd.f32 %v131, %v206
      %v208 = vpop.f32.mrb[0].mxu0
      %209 = vmatprep.mubr.f32.mxu0 0.0
      %210 = vmatmul.mubr.f32.gmra.mrb[0].mxu0 %v138
      %v211 = vpop.f32.mrb[0].mxu0
      %v212 = vadd.f32 %v131, %v211
      %v213 = vpop.f32.mrb[0].mxu0
      %214 = vdwg.mxu0
      %v215 = vld [vmem:[#allocation8] sm:$0xff]
      %v216 = vld [vmem:[#allocation8 + $0x8] sm:$0xff]
      %v217 = vld [vmem:[#allocation8 + $0x10] sm:$0xff]
      %v218 = vld [vmem:[#allocation8 + $0x18] sm:$0xff]
      %v219 = vld [vmem:[%s4] sm:$0x1]
      %v221 = vlaneseq
      %v222 = vshrl.u32 %v221, 7
      %v223 = vsub.s32 0, %v222
      %v224 = vrot.slane %v219, %v223
      %226 = vmatprep.subr.mxu0 0.0
      %227 = vmatpush1.msra.mxu0 %v215
      %228 = vmatprep.subr.mxu0 0.0
      %229 = vmatpush1.msra.mxu0 %v216
      %230 = vmatprep.subr.mxu0 0.0
      %231 = vmatpush1.msra.mxu0 %v217
      %232 = vmatprep.subr.mxu0 0.0
      %233 = vmatpush1.msra.mxu0 %v218
      %234 = vmatprep.subr.mxu0 0.0
      %235 = vmatpush1.msra.mxu0 0.0
      %236 = vmatprep.subr.mxu0 0.0
      %237 = vmatpush1.msra.mxu0 0.0
      %238 = vmatprep.subr.mxu0 0.0
      %239 = vmatpush1.msra.mxu0 0.0
      %240 = vmatprep.subr.mxu0 0.0
      %241 = vmatpush1.msra.mxu0 0.0
      %242 = vmatprep.subr.mxu0 0.0
      %243 = vmatpush1.msra.mxu0 0.0
      %244 = vmatprep.subr.mxu0 0.0
      %245 = vmatpush1.msra.mxu0 0.0
      %246 = vmatprep.subr.mxu0 0.0
      %247 = vmatpush1.msra.mxu0 0.0
      %248 = vmatprep.subr.mxu0 0.0
      %249 = vmatpush1.msra.mxu0 0.0
      %250 = vmatprep.subr.mxu0 0.0
      %251 = vmatpush1.msra.mxu0 0.0
      %252 = vmatprep.subr.mxu0 0.0
      %253 = vmatpush1.msra.mxu0 0.0
      %254 = vmatprep.subr.mxu0 0.0
      %255 = vmatpush1.msra.mxu0 0.0
      %256 = vmatprep.subr.mxu0 0.0
      %257 = vmatpush1.msra.mxu0 0.0
      %258 = vmatprep.subr.mxu0 0.0
      %259 = vmatpush1.msra.mxu0 0.0
      %260 = vmatprep.subr.mxu0 0.0
      %261 = vmatpush1.msra.mxu0 0.0
      %262 = vmatprep.subr.mxu0 0.0
      %263 = vmatpush1.msra.mxu0 0.0
      %264 = vmatprep.subr.mxu0 0.0
      %265 = vmatpush1.msra.mxu0 0.0
      %266 = vmatprep.subr.mxu0 0.0
      %267 = vmatpush1.msra.mxu0 0.0
      %268 = vmatprep.subr.mxu0 0.0
      %269 = vmatpush1.msra.mxu0 0.0
      %270 = vmatprep.subr.mxu0 0.0
      %271 = vmatpush1.msra.mxu0 0.0
      %272 = vmatprep.subr.mxu0 0.0
      %273 = vmatpush1.msra.mxu0 0.0
      %274 = vmatprep.subr.mxu0 0.0
      %275 = vmatpush1.msra.mxu0 0.0
      %276 = vmatprep.subr.mxu0 0.0
      %277 = vmatpush1.msra.mxu0 0.0
      %278 = vmatprep.subr.mxu0 0.0
      %279 = vmatpush1.msra.mxu0 0.0
      %280 = vmatprep.subr.mxu0 0.0
      %281 = vmatpush1.msra.mxu0 0.0
      %282 = vmatprep.subr.mxu0 0.0
      %283 = vmatpush1.msra.mxu0 0.0
      %284 = vmatprep.subr.mxu0 0.0
      %285 = vmatpush1.msra.mxu0 0.0
      %286 = vmatprep.subr.mxu0 0.0
      %287 = vmatpush1.msra.mxu0 0.0
      %288 = vmatprep.subr.mxu0 0.0
      %289 = vmatpush1.msra.mxu0 0.0
      %290 = vmatprep.mubr.f32.mxu0 0.0
      %291 = vmatmul.mubr.f32.gmra.mrb[0].mxu0 %v135
      %v292 = vpop.f32.mrb[0].mxu0
      %v293 = vadd.f32 %v224, %v292
      %v294 = vpop.f32.mrb[0].mxu0
      %295 = vmatprep.mubr.f32.mxu0 0.0
      %296 = vmatmul.mubr.f32.gmra.mrb[0].mxu0 %v138
      %v297 = vpop.f32.mrb[0].mxu0
      %v298 = vadd.f32 %v224, %v297
      %v299 = vpop.f32.mrb[0].mxu0
      %300 = vdwg.mxu0
      %v301 = vld [vmem:[#allocation9] sm:$0xff]
      %v302 = vld [vmem:[#allocation9 + $0x8] sm:$0xff]
      %v303 = vld [vmem:[#allocation9 + $0x10] sm:$0xff]
      %v304 = vld [vmem:[#allocation9 + $0x18] sm:$0xff]
      %v305 = vld [vmem:[%s6] sm:$0x1]
      %v307 = vlaneseq
      %v308 = vshrl.u32 %v307, 7
      %v309 = vsub.s32 0, %v308
      %v310 = vrot.slane %v305, %v309
      %312 = vmatprep.subr.mxu0 0.0
      %313 = vmatpush1.msra.mxu0 %v301
      %314 = vmatprep.subr.mxu0 0.0
      %315 = vmatpush1.msra.mxu0 %v302
      %316 = vmatprep.subr.mxu0 0.0
      %317 = vmatpush1.msra.mxu0 %v303
      %318 = vmatprep.subr.mxu0 0.0
      %319 = vmatpush1.msra.mxu0 %v304
      %320 = vmatprep.subr.mxu0 0.0
      %321 = vmatpush1.msra.mxu0 0.0
      %322 = vmatprep.subr.mxu0 0.0
      %323 = vmatpush1.msra.mxu0 0.0
      %324 = vmatprep.subr.mxu0 0.0
      %325 = vmatpush1.msra.mxu0 0.0
      %326 = vmatprep.subr.mxu0 0.0
      %327 = vmatpush1.msra.mxu0 0.0
      %328 = vmatprep.subr.mxu0 0.0
      %329 = vmatpush1.msra.mxu0 0.0
      %330 = vmatprep.subr.mxu0 0.0
      %331 = vmatpush1.msra.mxu0 0.0
      %332 = vmatprep.subr.mxu0 0.0
      %333 = vmatpush1.msra.mxu0 0.0
      %334 = vmatprep.subr.mxu0 0.0
      %335 = vmatpush1.msra.mxu0 0.0
      %336 = vmatprep.subr.mxu0 0.0
      %337 = vmatpush1.msra.mxu0 0.0
      %338 = vmatprep.subr.mxu0 0.0
      %339 = vmatpush1.msra.mxu0 0.0
      %340 = vmatprep.subr.mxu0 0.0
      %341 = vmatpush1.msra.mxu0 0.0
      %342 = vmatprep.subr.mxu0 0.0
      %343 = vmatpush1.msra.mxu0 0.0
      %344 = vmatprep.subr.mxu0 0.0
      %345 = vmatpush1.msra.mxu0 0.0
      %346 = vmatprep.subr.mxu0 0.0
      %347 = vmatpush1.msra.mxu0 0.0
      %348 = vmatprep.subr.mxu0 0.0
      %349 = vmatpush1.msra.mxu0 0.0
      %350 = vmatprep.subr.mxu0 0.0
      %351 = vmatpush1.msra.mxu0 0.0
      %352 = vmatprep.subr.mxu0 0.0
      %353 = vmatpush1.msra.mxu0 0.0
      %354 = vmatprep.subr.mxu0 0.0
      %355 = vmatpush1.msra.mxu0 0.0
      %356 = vmatprep.subr.mxu0 0.0
      %357 = vmatpush1.msra.mxu0 0.0
      %358 = vmatprep.subr.mxu0 0.0
      %359 = vmatpush1.msra.mxu0 0.0
      %360 = vmatprep.subr.mxu0 0.0
      %361 = vmatpush1.msra.mxu0 0.0
      %362 = vmatprep.subr.mxu0 0.0
      %363 = vmatpush1.msra.mxu0 0.0
      %364 = vmatprep.subr.mxu0 0.0
      %365 = vmatpush1.msra.mxu0 0.0
      %366 = vmatprep.subr.mxu0 0.0
      %367 = vmatpush1.msra.mxu0 0.0
      %368 = vmatprep.subr.mxu0 0.0
      %369 = vmatpush1.msra.mxu0 0.0
      %370 = vmatprep.subr.mxu0 0.0
      %371 = vmatpush1.msra.mxu0 0.0
      %372 = vmatprep.subr.mxu0 0.0
      %373 = vmatpush1.msra.mxu0 0.0
      %374 = vmatprep.subr.mxu0 0.0
      %375 = vmatpush1.msra.mxu0 0.0
      %376 = vmatprep.mubr.f32.mxu0 0.0
      %377 = vmatmul.mubr.f32.gmra.mrb[0].mxu0 %v135
      %v378 = vpop.f32.mrb[0].mxu0
      %v379 = vadd.f32 %v310, %v378
      %v380 = vpop.f32.mrb[0].mxu0
      %381 = vmatprep.mubr.f32.mxu0 0.0
      %382 = vmatmul.mubr.f32.gmra.mrb[0].mxu0 %v138
      %v383 = vpop.f32.mrb[0].mxu0
      %v384 = vadd.f32 %v310, %v383
      %v385 = vpop.f32.mrb[0].mxu0
      %386 = vdwg.mxu0
      %v387 = vmul.f32 %v207, 0.35355338
      %v388 = vmul.f32 %v212, 0.35355338
      %vm389 = vcmask 64512
      %v391 = vsel %vm389, %v387, 0
      %v394 = vsel %vm389, %v293, 0
      %396 = vmatprep.subr.mxu0 0.0
      %397 = vmatpush1.xpose.msra.mxu0 %v394
      %398 = vmatprep.subr.mxu0 0.0
      %399 = vmatpush1.xpose.msra.mxu0 0.0
      %400 = vmatprep.subr.mxu0 0.0
      %401 = vmatpush1.xpose.msra.mxu0 0.0
      %402 = vmatprep.subr.mxu0 0.0
      %403 = vmatpush1.xpose.msra.mxu0 0.0
      %404 = vmatprep.subr.mxu0 0.0
      %405 = vmatpush1.xpose.msra.mxu0 0.0
      %406 = vmatprep.subr.mxu0 0.0
      %407 = vmatpush1.xpose.msra.mxu0 0.0
      %408 = vmatprep.subr.mxu0 0.0
      %409 = vmatpush1.xpose.msra.mxu0 0.0
      %410 = vmatprep.subr.mxu0 0.0
      %411 = vmatpush1.xpose.msra.mxu0 0.0
      %412 = vmatprep.subr.mxu0 0.0
      %413 = vmatpush1.xpose.msra.mxu0 0.0
      %414 = vmatprep.subr.mxu0 0.0
      %415 = vmatpush1.xpose.msra.mxu0 0.0
      %416 = vmatprep.subr.mxu0 0.0
      %417 = vmatpush1.xpose.msra.mxu0 0.0
      %418 = vmatprep.subr.mxu0 0.0
      %419 = vmatpush1.xpose.msra.mxu0 0.0
      %420 = vmatprep.subr.mxu0 0.0
      %421 = vmatpush1.xpose.msra.mxu0 0.0
      %422 = vmatprep.subr.mxu0 0.0
      %423 = vmatpush1.xpose.msra.mxu0 0.0
      %424 = vmatprep.subr.mxu0 0.0
      %425 = vmatpush1.xpose.msra.mxu0 0.0
      %426 = vmatprep.subr.mxu0 0.0
      %427 = vmatpush1.xpose.msra.mxu0 0.0
      %428 = vmatprep.subr.mxu0 0.0
      %429 = vmatpush1.xpose.msra.mxu0 0.0
      %430 = vmatprep.subr.mxu0 0.0
      %431 = vmatpush1.xpose.msra.mxu0 0.0
      %432 = vmatprep.subr.mxu0 0.0
      %433 = vmatpush1.xpose.msra.mxu0 0.0
      %434 = vmatprep.subr.mxu0 0.0
      %435 = vmatpush1.xpose.msra.mxu0 0.0
      %436 = vmatprep.subr.mxu0 0.0
      %437 = vmatpush1.xpose.msra.mxu0 0.0
      %438 = vmatprep.subr.mxu0 0.0
      %439 = vmatpush1.xpose.msra.mxu0 0.0
      %440 = vmatprep.subr.mxu0 0.0
      %441 = vmatpush1.xpose.msra.mxu0 0.0
      %442 = vmatprep.subr.mxu0 0.0
      %443 = vmatpush1.xpose.msra.mxu0 0.0
      %444 = vmatprep.subr.mxu0 0.0
      %445 = vmatpush1.xpose.msra.mxu0 0.0
      %446 = vmatprep.subr.mxu0 0.0
      %447 = vmatpush1.xpose.msra.mxu0 0.0
      %448 = vmatprep.subr.mxu0 0.0
      %449 = vmatpush1.xpose.msra.mxu0 0.0
      %450 = vmatprep.subr.mxu0 0.0
      %451 = vmatpush1.xpose.msra.mxu0 0.0
      %452 = vmatprep.subr.mxu0 0.0
      %453 = vmatpush1.xpose.msra.mxu0 0.0
      %454 = vmatprep.subr.mxu0 0.0
      %455 = vmatpush1.xpose.msra.mxu0 0.0
      %456 = vmatprep.subr.mxu0 0.0
      %457 = vmatpush1.xpose.msra.mxu0 0.0
      %458 = vmatprep.subr.mxu0 0.0
      %459 = vmatpush1.xpose.msra.mxu0 0.0
      %460 = vmatprep.mubr.f32.mxu0 0.0
      %461 = vmatmul.mubr.f32.gmra.mrb[0].mxu0 %v391
      %v462 = vpop.f32.mrb[0].mxu0
      %v463 = vadd.f32 0.0, %v462
      %v464 = vpop.f32.mrb[0].mxu0
      %465 = vdwg.mxu0
      %v467 = vsel %vm389, %v388, 0
      %v470 = vsel %vm389, %v298, 0
      %472 = vmatprep.subr.mxu0 0.0
      %473 = vmatpush1.xpose.msra.mxu0 %v470
      %474 = vmatprep.subr.mxu0 0.0
      %475 = vmatpush1.xpose.msra.mxu0 0.0
      %476 = vmatprep.subr.mxu0 0.0
      %477 = vmatpush1.xpose.msra.mxu0 0.0
      %478 = vmatprep.subr.mxu0 0.0
      %479 = vmatpush1.xpose.msra.mxu0 0.0
      %480 = vmatprep.subr.mxu0 0.0
      %481 = vmatpush1.xpose.msra.mxu0 0.0
      %482 = vmatprep.subr.mxu0 0.0
      %483 = vmatpush1.xpose.msra.mxu0 0.0
      %484 = vmatprep.subr.mxu0 0.0
      %485 = vmatpush1.xpose.msra.mxu0 0.0
      %486 = vmatprep.subr.mxu0 0.0
      %487 = vmatpush1.xpose.msra.mxu0 0.0
      %488 = vmatprep.subr.mxu0 0.0
      %489 = vmatpush1.xpose.msra.mxu0 0.0
      %490 = vmatprep.subr.mxu0 0.0
      %491 = vmatpush1.xpose.msra.mxu0 0.0
      %492 = vmatprep.subr.mxu0 0.0
      %493 = vmatpush1.xpose.msra.mxu0 0.0
      %494 = vmatprep.subr.mxu0 0.0
      %495 = vmatpush1.xpose.msra.mxu0 0.0
      %496 = vmatprep.subr.mxu0 0.0
      %497 = vmatpush1.xpose.msra.mxu0 0.0
      %498 = vmatprep.subr.mxu0 0.0
      %499 = vmatpush1.xpose.msra.mxu0 0.0
      %500 = vmatprep.subr.mxu0 0.0
      %501 = vmatpush1.xpose.msra.mxu0 0.0
      %502 = vmatprep.subr.mxu0 0.0
      %503 = vmatpush1.xpose.msra.mxu0 0.0
      %504 = vmatprep.subr.mxu0 0.0
      %505 = vmatpush1.xpose.msra.mxu0 0.0
      %506 = vmatprep.subr.mxu0 0.0
      %507 = vmatpush1.xpose.msra.mxu0 0.0
      %508 = vmatprep.subr.mxu0 0.0
      %509 = vmatpush1.xpose.msra.mxu0 0.0
      %510 = vmatprep.subr.mxu0 0.0
      %511 = vmatpush1.xpose.msra.mxu0 0.0
      %512 = vmatprep.subr.mxu0 0.0
      %513 = vmatpush1.xpose.msra.mxu0 0.0
      %514 = vmatprep.subr.mxu0 0.0
      %515 = vmatpush1.xpose.msra.mxu0 0.0
      %516 = vmatprep.subr.mxu0 0.0
      %517 = vmatpush1.xpose.msra.mxu0 0.0
      %518 = vmatprep.subr.mxu0 0.0
      %519 = vmatpush1.xpose.msra.mxu0 0.0
      %520 = vmatprep.subr.mxu0 0.0
      %521 = vmatpush1.xpose.msra.mxu0 0.0
      %522 = vmatprep.subr.mxu0 0.0
      %523 = vmatpush1.xpose.msra.mxu0 0.0
      %524 = vmatprep.subr.mxu0 0.0
      %525 = vmatpush1.xpose.msra.mxu0 0.0
      %526 = vmatprep.subr.mxu0 0.0
      %527 = vmatpush1.xpose.msra.mxu0 0.0
      %528 = vmatprep.subr.mxu0 0.0
      %529 = vmatpush1.xpose.msra.mxu0 0.0
      %530 = vmatprep.subr.mxu0 0.0
      %531 = vmatpush1.xpose.msra.mxu0 0.0
      %532 = vmatprep.subr.mxu0 0.0
      %533 = vmatpush1.xpose.msra.mxu0 0.0
      %534 = vmatprep.subr.mxu0 0.0
      %535 = vmatpush1.xpose.msra.mxu0 0.0
      %536 = vmatprep.mubr.f32.mxu0 0.0
      %537 = vmatmul.mubr.f32.gmra.mrb[0].mxu0 %v467
      %v538 = vpop.f32.mrb[0].mxu0
      %v539 = vadd.f32 0.0, %v538
      %v540 = vpop.f32.mrb[0].mxu0
      %541 = vdwg.mxu0
      %v542 = vsel %vm389, %v463, -inf
      %543 = vmax.xlane.f32.xlu0 %v542
      %v544 = vpop.xlane.xlu0 %543
      %v545 = vsel %vm389, %v539, -inf
      %546 = vmax.xlane.f32.xlu0 %v545
      %v547 = vpop.xlane.xlu0 %546
      %v548 = vsub.f32 %v463, %v544
      %v549 = vsub.f32 %v539, %v547
      %v550 = vmul.f32 %v548, 1.442695
      %v551 = vpow.pop %v550
      %v552 = vmul.f32 %v549, 1.442695
      %v553 = vpow.pop %v552
      %v554 = vsel %vm389, %v551, 0.0
      %555 = vadd.xlane.f32.xlu0 %v554
      %v556 = vpop.xlane.xlu0 %555
      %v557 = vsel %vm389, %v553, 0.0
      %558 = vadd.xlane.f32.xlu0 %v557
      %v559 = vpop.xlane.xlu0 %558
      %v560 = vrcp.pop %v556
      %v561 = vmul.f32 %v551, %v560
      %v562 = vrcp.pop %v559
      %v563 = vmul.f32 %v553, %v562
      %564 = vst.msk [vmem:[#allocation13] sm:$0xff] %vm389, %v561
      %565 = vst.msk [vmem:[#allocation13 + $0x8] sm:$0xff] %vm389, %v563
      %v567 = vrot.slane %v561, 7
      %v568 = vsel %vm389, %v567, 0
      %570 = vmatprep.subr.mxu0 0.0
      %571 = vmatpush1.msra.mxu0 %v379
      %572 = vmatprep.subr.mxu0 0.0
      %573 = vmatpush1.msra.mxu0 0.0
      %574 = vmatprep.subr.mxu0 0.0
      %575 = vmatpush1.msra.mxu0 0.0
      %576 = vmatprep.subr.mxu0 0.0
      %577 = vmatpush1.msra.mxu0 0.0
      %578 = vmatprep.subr.mxu0 0.0
      %579 = vmatpush1.msra.mxu0 0.0
      %580 = vmatprep.subr.mxu0 0.0
      %581 = vmatpush1.msra.mxu0 0.0
      %582 = vmatprep.subr.mxu0 0.0
      %583 = vmatpush1.msra.mxu0 0.0
      %584 = vmatprep.subr.mxu0 0.0
      %585 = vmatpush1.msra.mxu0 0.0
      %586 = vmatprep.subr.mxu0 0.0
      %587 = vmatpush1.msra.mxu0 0.0
      %588 = vmatprep.subr.mxu0 0.0
      %589 = vmatpush1.msra.mxu0 0.0
      %590 = vmatprep.subr.mxu0 0.0
      %591 = vmatpush1.msra.mxu0 0.0
      %592 = vmatprep.subr.mxu0 0.0
      %593 = vmatpush1.msra.mxu0 0.0
      %594 = vmatprep.subr.mxu0 0.0
      %595 = vmatpush1.msra.mxu0 0.0
      %596 = vmatprep.subr.mxu0 0.0
      %597 = vmatpush1.msra.mxu0 0.0
      %598 = vmatprep.subr.mxu0 0.0
      %599 = vmatpush1.msra.mxu0 0.0
      %600 = vmatprep.subr.mxu0 0.0
      %601 = vmatpush1.msra.mxu0 0.0
      %602 = vmatprep.subr.mxu0 0.0
      %603 = vmatpush1.msra.mxu0 0.0
      %604 = vmatprep.subr.mxu0 0.0
      %605 = vmatpush1.msra.mxu0 0.0
      %606 = vmatprep.subr.mxu0 0.0
      %607 = vmatpush1.msra.mxu0 0.0
      %608 = vmatprep.subr.mxu0 0.0
      %609 = vmatpush1.msra.mxu0 0.0
      %610 = vmatprep.subr.mxu0 0.0
      %611 = vmatpush1.msra.mxu0 0.0
      %612 = vmatprep.subr.mxu0 0.0
      %613 = vmatpush1.msra.mxu0 0.0
      %614 = vmatprep.subr.mxu0 0.0
      %615 = vmatpush1.msra.mxu0 0.0
      %616 = vmatprep.subr.mxu0 0.0
      %617 = vmatpush1.msra.mxu0 0.0
      %618 = vmatprep.subr.mxu0 0.0
      %619 = vmatpush1.msra.mxu0 0.0
      %620 = vmatprep.subr.mxu0 0.0
      %621 = vmatpush1.msra.mxu0 0.0
      %622 = vmatprep.subr.mxu0 0.0
      %623 = vmatpush1.msra.mxu0 0.0
      %624 = vmatprep.subr.mxu0 0.0
      %625 = vmatpush1.msra.mxu0 0.0
      %626 = vmatprep.subr.mxu0 0.0
      %627 = vmatpush1.msra.mxu0 0.0
      %628 = vmatprep.subr.mxu0 0.0
      %629 = vmatpush1.msra.mxu0 0.0
      %630 = vmatprep.subr.mxu0 0.0
      %631 = vmatpush1.msra.mxu0 0.0
      %632 = vmatprep.subr.mxu0 0.0
      %633 = vmatpush1.msra.mxu0 0.0
      %634 = vmatprep.mubr.f32.mxu0 0.0
      %635 = vmatmul.mubr.f32.gmra.mrb[0].mxu0 %v568
      %v636 = vpop.f32.mrb[0].mxu0
      %v637 = vadd.f32 0.0, %v636
      %v638 = vpop.f32.mrb[0].mxu0
      %639 = vdwg.mxu0
      %v641 = vrot.slane %v563, 7
      %v642 = vsel %vm389, %v641, 0
      %644 = vmatprep.subr.mxu0 0.0
      %645 = vmatpush1.msra.mxu0 %v384
      %646 = vmatprep.subr.mxu0 0.0
      %647 = vmatpush1.msra.mxu0 0.0
      %648 = vmatprep.subr.mxu0 0.0
      %649 = vmatpush1.msra.mxu0 0.0
      %650 = vmatprep.subr.mxu0 0.0
      %651 = vmatpush1.msra.mxu0 0.0
      %652 = vmatprep.subr.mxu0 0.0
      %653 = vmatpush1.msra.mxu0 0.0
      %654 = vmatprep.subr.mxu0 0.0
      %655 = vmatpush1.msra.mxu0 0.0
      %656 = vmatprep.subr.mxu0 0.0
      %657 = vmatpush1.msra.mxu0 0.0
      %658 = vmatprep.subr.mxu0 0.0
      %659 = vmatpush1.msra.mxu0 0.0
      %660 = vmatprep.subr.mxu0 0.0
      %661 = vmatpush1.msra.mxu0 0.0
      %662 = vmatprep.subr.mxu0 0.0
      %663 = vmatpush1.msra.mxu0 0.0
      %664 = vmatprep.subr.mxu0 0.0
      %665 = vmatpush1.msra.mxu0 0.0
      %666 = vmatprep.subr.mxu0 0.0
      %667 = vmatpush1.msra.mxu0 0.0
      %668 = vmatprep.subr.mxu0 0.0
      %669 = vmatpush1.msra.mxu0 0.0
      %670 = vmatprep.subr.mxu0 0.0
      %671 = vmatpush1.msra.mxu0 0.0
      %672 = vmatprep.subr.mxu0 0.0
      %673 = vmatpush1.msra.mxu0 0.0
      %674 = vmatprep.subr.mxu0 0.0
      %675 = vmatpush1.msra.mxu0 0.0
      %676 = vmatprep.subr.mxu0 0.0
      %677 = vmatpush1.msra.mxu0 0.0
      %678 = vmatprep.subr.mxu0 0.0
      %679 = vmatpush1.msra.mxu0 0.0
      %680 = vmatprep.subr.mxu0 0.0
      %681 = vmatpush1.msra.mxu0 0.0
      %682 = vmatprep.subr.mxu0 0.0
      %683 = vmatpush1.msra.mxu0 0.0
      %684 = vmatprep.subr.mxu0 0.0
      %685 = vmatpush1.msra.mxu0 0.0
      %686 = vmatprep.subr.mxu0 0.0
      %687 = vmatpush1.msra.mxu0 0.0
      %688 = vmatprep.subr.mxu0 0.0
      %689 = vmatpush1.msra.mxu0 0.0
      %690 = vmatprep.subr.mxu0 0.0
      %691 = vmatpush1.msra.mxu0 0.0
      %692 = vmatprep.subr.mxu0 0.0
      %693 = vmatpush1.msra.mxu0 0.0
      %694 = vmatprep.subr.mxu0 0.0
      %695 = vmatpush1.msra.mxu0 0.0
      %696 = vmatprep.subr.mxu0 0.0
      %697 = vmatpush1.msra.mxu0 0.0
      %698 = vmatprep.subr.mxu0 0.0
      %699 = vmatpush1.msra.mxu0 0.0
      %700 = vmatprep.subr.mxu0 0.0
      %701 = vmatpush1.msra.mxu0 0.0
      %702 = vmatprep.subr.mxu0 0.0
      %703 = vmatpush1.msra.mxu0 0.0
      %704 = vmatprep.subr.mxu0 0.0
      %705 = vmatpush1.msra.mxu0 0.0
      %706 = vmatprep.subr.mxu0 0.0
      %707 = vmatpush1.msra.mxu0 0.0
      %708 = vmatprep.mubr.f32.mxu0 0.0
      %709 = vmatmul.mubr.f32.gmra.mrb[0].mxu0 %v642
      %v710 = vpop.f32.mrb[0].mxu0
      %v711 = vadd.f32 0.0, %v710
      %v712 = vpop.f32.mrb[0].mxu0
      %713 = vdwg.mxu0
      %714 = vrot.lane.b32.xlu0 %v387, 120
      %v715 = vpop.permute.xlu0 %714
      %716 = vrot.lane.b32.xlu0 %v293, 120
      %v717 = vpop.permute.xlu0 %716
      %v718 = vsel %vm389, %v715, 0
      %v720 = vsel %vm389, %v717, 0
      %722 = vmatprep.subr.mxu0 0.0
      %723 = vmatpush1.xpose.msra.mxu0 %v720
      %724 = vmatprep.subr.mxu0 0.0
      %725 = vmatpush1.xpose.msra.mxu0 0.0
      %726 = vmatprep.subr.mxu0 0.0
      %727 = vmatpush1.xpose.msra.mxu0 0.0
      %728 = vmatprep.subr.mxu0 0.0
      %729 = vmatpush1.xpose.msra.mxu0 0.0
      %730 = vmatprep.subr.mxu0 0.0
      %731 = vmatpush1.xpose.msra.mxu0 0.0
      %732 = vmatprep.subr.mxu0 0.0
      %733 = vmatpush1.xpose.msra.mxu0 0.0
      %734 = vmatprep.subr.mxu0 0.0
      %735 = vmatpush1.xpose.msra.mxu0 0.0
      %736 = vmatprep.subr.mxu0 0.0
      %737 = vmatpush1.xpose.msra.mxu0 0.0
      %738 = vmatprep.subr.mxu0 0.0
      %739 = vmatpush1.xpose.msra.mxu0 0.0
      %740 = vmatprep.subr.mxu0 0.0
      %741 = vmatpush1.xpose.msra.mxu0 0.0
      %742 = vmatprep.subr.mxu0 0.0
      %743 = vmatpush1.xpose.msra.mxu0 0.0
      %744 = vmatprep.subr.mxu0 0.0
      %745 = vmatpush1.xpose.msra.mxu0 0.0
      %746 = vmatprep.subr.mxu0 0.0
      %747 = vmatpush1.xpose.msra.mxu0 0.0
      %748 = vmatprep.subr.mxu0 0.0
      %749 = vmatpush1.xpose.msra.mxu0 0.0
      %750 = vmatprep.subr.mxu0 0.0
      %751 = vmatpush1.xpose.msra.mxu0 0.0
      %752 = vmatprep.subr.mxu0 0.0
      %753 = vmatpush1.xpose.msra.mxu0 0.0
      %754 = vmatprep.subr.mxu0 0.0
      %755 = vmatpush1.xpose.msra.mxu0 0.0
      %756 = vmatprep.subr.mxu0 0.0
      %757 = vmatpush1.xpose.msra.mxu0 0.0
      %758 = vmatprep.subr.mxu0 0.0
      %759 = vmatpush1.xpose.msra.mxu0 0.0
      %760 = vmatprep.subr.mxu0 0.0
      %761 = vmatpush1.xpose.msra.mxu0 0.0
      %762 = vmatprep.subr.mxu0 0.0
      %763 = vmatpush1.xpose.msra.mxu0 0.0
      %764 = vmatprep.subr.mxu0 0.0
      %765 = vmatpush1.xpose.msra.mxu0 0.0
      %766 = vmatprep.subr.mxu0 0.0
      %767 = vmatpush1.xpose.msra.mxu0 0.0
      %768 = vmatprep.subr.mxu0 0.0
      %769 = vmatpush1.xpose.msra.mxu0 0.0
      %770 = vmatprep.subr.mxu0 0.0
      %771 = vmatpush1.xpose.msra.mxu0 0.0
      %772 = vmatprep.subr.mxu0 0.0
      %773 = vmatpush1.xpose.msra.mxu0 0.0
      %774 = vmatprep.subr.mxu0 0.0
      %775 = vmatpush1.xpose.msra.mxu0 0.0
      %776 = vmatprep.subr.mxu0 0.0
      %777 = vmatpush1.xpose.msra.mxu0 0.0
      %778 = vmatprep.subr.mxu0 0.0
      %779 = vmatpush1.xpose.msra.mxu0 0.0
      %780 = vmatprep.subr.mxu0 0.0
      %781 = vmatpush1.xpose.msra.mxu0 0.0
      %782 = vmatprep.subr.mxu0 0.0
      %783 = vmatpush1.xpose.msra.mxu0 0.0
      %784 = vmatprep.subr.mxu0 0.0
      %785 = vmatpush1.xpose.msra.mxu0 0.0
      %786 = vmatprep.mubr.f32.mxu0 0.0
      %787 = vmatmul.mubr.f32.gmra.mrb[0].mxu0 %v718
      %v788 = vpop.f32.mrb[0].mxu0
      %v789 = vadd.f32 0.0, %v788
      %v790 = vpop.f32.mrb[0].mxu0
      %791 = vdwg.mxu0
      %792 = vrot.lane.b32.xlu0 %v388, 120
      %v793 = vpop.permute.xlu0 %792
      %794 = vrot.lane.b32.xlu0 %v298, 120
      %v795 = vpop.permute.xlu0 %794
      %v796 = vsel %vm389, %v793, 0
      %v798 = vsel %vm389, %v795, 0
      %800 = vmatprep.subr.mxu0 0.0
      %801 = vmatpush1.xpose.msra.mxu0 %v798
      %802 = vmatprep.subr.mxu0 0.0
      %803 = vmatpush1.xpose.msra.mxu0 0.0
      %804 = vmatprep.subr.mxu0 0.0
      %805 = vmatpush1.xpose.msra.mxu0 0.0
      %806 = vmatprep.subr.mxu0 0.0
      %807 = vmatpush1.xpose.msra.mxu0 0.0
      %808 = vmatprep.subr.mxu0 0.0
      %809 = vmatpush1.xpose.msra.mxu0 0.0
      %810 = vmatprep.subr.mxu0 0.0
      %811 = vmatpush1.xpose.msra.mxu0 0.0
      %812 = vmatprep.subr.mxu0 0.0
      %813 = vmatpush1.xpose.msra.mxu0 0.0
      %814 = vmatprep.subr.mxu0 0.0
      %815 = vmatpush1.xpose.msra.mxu0 0.0
      %816 = vmatprep.subr.mxu0 0.0
      %817 = vmatpush1.xpose.msra.mxu0 0.0
      %818 = vmatprep.subr.mxu0 0.0
      %819 = vmatpush1.xpose.msra.mxu0 0.0
      %820 = vmatprep.subr.mxu0 0.0
      %821 = vmatpush1.xpose.msra.mxu0 0.0
      %822 = vmatprep.subr.mxu0 0.0
      %823 = vmatpush1.xpose.msra.mxu0 0.0
      %824 = vmatprep.subr.mxu0 0.0
      %825 = vmatpush1.xpose.msra.mxu0 0.0
      %826 = vmatprep.subr.mxu0 0.0
      %827 = vmatpush1.xpose.msra.mxu0 0.0
      %828 = vmatprep.subr.mxu0 0.0
      %829 = vmatpush1.xpose.msra.mxu0 0.0
      %830 = vmatprep.subr.mxu0 0.0
      %831 = vmatpush1.xpose.msra.mxu0 0.0
      %832 = vmatprep.subr.mxu0 0.0
      %833 = vmatpush1.xpose.msra.mxu0 0.0
      %834 = vmatprep.subr.mxu0 0.0
      %835 = vmatpush1.xpose.msra.mxu0 0.0
      %836 = vmatprep.subr.mxu0 0.0
      %837 = vmatpush1.xpose.msra.mxu0 0.0
      %838 = vmatprep.subr.mxu0 0.0
      %839 = vmatpush1.xpose.msra.mxu0 0.0
      %840 = vmatprep.subr.mxu0 0.0
      %841 = vmatpush1.xpose.msra.mxu0 0.0
      %842 = vmatprep.subr.mxu0 0.0
      %843 = vmatpush1.xpose.msra.mxu0 0.0
      %844 = vmatprep.subr.mxu0 0.0
      %845 = vmatpush1.xpose.msra.mxu0 0.0
      %846 = vmatprep.subr.mxu0 0.0
      %847 = vmatpush1.xpose.msra.mxu0 0.0
      %848 = vmatprep.subr.mxu0 0.0
      %849 = vmatpush1.xpose.msra.mxu0 0.0
      %850 = vmatprep.subr.mxu0 0.0
      %851 = vmatpush1.xpose.msra.mxu0 0.0
      %852 = vmatprep.subr.mxu0 0.0
      %853 = vmatpush1.xpose.msra.mxu0 0.0
      %854 = vmatprep.subr.mxu0 0.0
      %855 = vmatpush1.xpose.msra.mxu0 0.0
      %856 = vmatprep.subr.mxu0 0.0
      %857 = vmatpush1.xpose.msra.mxu0 0.0
      %858 = vmatprep.subr.mxu0 0.0
      %859 = vmatpush1.xpose.msra.mxu0 0.0
      %860 = vmatprep.subr.mxu0 0.0
      %861 = vmatpush1.xpose.msra.mxu0 0.0
      %862 = vmatprep.subr.mxu0 0.0
      %863 = vmatpush1.xpose.msra.mxu0 0.0
      %864 = vmatprep.mubr.f32.mxu0 0.0
      %865 = vmatmul.mubr.f32.gmra.mrb[0].mxu0 %v796
      %v866 = vpop.f32.mrb[0].mxu0
      %v867 = vadd.f32 0.0, %v866
      %v868 = vpop.f32.mrb[0].mxu0
      %869 = vdwg.mxu0
      %v870 = vsel %vm389, %v789, -inf
      %871 = vmax.xlane.f32.xlu0 %v870
      %v872 = vpop.xlane.xlu0 %871
      %v873 = vsel %vm389, %v867, -inf
      %874 = vmax.xlane.f32.xlu0 %v873
      %v875 = vpop.xlane.xlu0 %874
      %v876 = vsub.f32 %v789, %v872
      %v877 = vsub.f32 %v867, %v875
      %v878 = vmul.f32 %v876, 1.442695
      %v879 = vpow.pop %v878
      %v880 = vmul.f32 %v877, 1.442695
      %v881 = vpow.pop %v880
      %v882 = vsel %vm389, %v879, 0.0
      %883 = vadd.xlane.f32.xlu0 %v882
      %v884 = vpop.xlane.xlu0 %883
      %v885 = vsel %vm389, %v881, 0.0
      %886 = vadd.xlane.f32.xlu0 %v885
      %v887 = vpop.xlane.xlu0 %886
      %v888 = vrcp.pop %v884
      %v889 = vmul.f32 %v879, %v888
      %v890 = vrcp.pop %v887
      %v891 = vmul.f32 %v881, %v890
      %894 = vrot.lane.b32.xlu0 %v889, 8
      %v895 = vpop.permute.xlu0 %894
      %896 = vrot.lane.b32.xlu0 %v891, 8
      %v897 = vpop.permute.xlu0 %896
      %vm900 = vcmask 130112
      %901 = vst.msk [vmem:[#allocation13] sm:$0xff] %vm900, %v895
      %902 = vst.msk [vmem:[#allocation13 + $0x8] sm:$0xff] %vm900, %v897
      %v903 = vrot.slane %v889, 7
      %905 = vrot.lane.b32.xlu0 %v379, 120
      %v906 = vpop.permute.xlu0 %905
      %v908 = vsel %vm389, %v903, 0
      %910 = vmatprep.subr.mxu0 0.0
      %911 = vmatpush1.msra.mxu0 %v906
      %912 = vmatprep.subr.mxu0 0.0
      %913 = vmatpush1.msra.mxu0 0.0
      %914 = vmatprep.subr.mxu0 0.0
      %915 = vmatpush1.msra.mxu0 0.0
      %916 = vmatprep.subr.mxu0 0.0
      %917 = vmatpush1.msra.mxu0 0.0
      %918 = vmatprep.subr.mxu0 0.0
      %919 = vmatpush1.msra.mxu0 0.0
      %920 = vmatprep.subr.mxu0 0.0
      %921 = vmatpush1.msra.mxu0 0.0
      %922 = vmatprep.subr.mxu0 0.0
      %923 = vmatpush1.msra.mxu0 0.0
      %924 = vmatprep.subr.mxu0 0.0
      %925 = vmatpush1.msra.mxu0 0.0
      %926 = vmatprep.subr.mxu0 0.0
      %927 = vmatpush1.msra.mxu0 0.0
      %928 = vmatprep.subr.mxu0 0.0
      %929 = vmatpush1.msra.mxu0 0.0
      %930 = vmatprep.subr.mxu0 0.0
      %931 = vmatpush1.msra.mxu0 0.0
      %932 = vmatprep.subr.mxu0 0.0
      %933 = vmatpush1.msra.mxu0 0.0
      %934 = vmatprep.subr.mxu0 0.0
      %935 = vmatpush1.msra.mxu0 0.0
      %936 = vmatprep.subr.mxu0 0.0
      %937 = vmatpush1.msra.mxu0 0.0
      %938 = vmatprep.subr.mxu0 0.0
      %939 = vmatpush1.msra.mxu0 0.0
      %940 = vmatprep.subr.mxu0 0.0
      %941 = vmatpush1.msra.mxu0 0.0
      %942 = vmatprep.subr.mxu0 0.0
      %943 = vmatpush1.msra.mxu0 0.0
      %944 = vmatprep.subr.mxu0 0.0
      %945 = vmatpush1.msra.mxu0 0.0
      %946 = vmatprep.subr.mxu0 0.0
      %947 = vmatpush1.msra.mxu0 0.0
      %948 = vmatprep.subr.mxu0 0.0
      %949 = vmatpush1.msra.mxu0 0.0
      %950 = vmatprep.subr.mxu0 0.0
      %951 = vmatpush1.msra.mxu0 0.0
      %952 = vmatprep.subr.mxu0 0.0
      %953 = vmatpush1.msra.mxu0 0.0
      %954 = vmatprep.subr.mxu0 0.0
      %955 = vmatpush1.msra.mxu0 0.0
      %956 = vmatprep.subr.mxu0 0.0
      %957 = vmatpush1.msra.mxu0 0.0
      %958 = vmatprep.subr.mxu0 0.0
      %959 = vmatpush1.msra.mxu0 0.0
      %960 = vmatprep.subr.mxu0 0.0
      %961 = vmatpush1.msra.mxu0 0.0
      %962 = vmatprep.subr.mxu0 0.0
      %963 = vmatpush1.msra.mxu0 0.0
      %964 = vmatprep.subr.mxu0 0.0
      %965 = vmatpush1.msra.mxu0 0.0
      %966 = vmatprep.subr.mxu0 0.0
      %967 = vmatpush1.msra.mxu0 0.0
      %968 = vmatprep.subr.mxu0 0.0
      %969 = vmatpush1.msra.mxu0 0.0
      %970 = vmatprep.subr.mxu0 0.0
      %971 = vmatpush1.msra.mxu0 0.0
      %972 = vmatprep.subr.mxu0 0.0
      %973 = vmatpush1.msra.mxu0 0.0
      %974 = vmatprep.mubr.f32.mxu0 0.0
      %975 = vmatmul.mubr.f32.gmra.mrb[0].mxu0 %v908
      %v976 = vpop.f32.mrb[0].mxu0
      %v977 = vadd.f32 0.0, %v976
      %v978 = vpop.f32.mrb[0].mxu0
      %979 = vdwg.mxu0
      %v980 = vrot.slane %v891, 7
      %982 = vrot.lane.b32.xlu0 %v384, 120
      %v983 = vpop.permute.xlu0 %982
      %v985 = vsel %vm389, %v980, 0
      %987 = vmatprep.subr.mxu0 0.0
      %988 = vmatpush1.msra.mxu0 %v983
      %989 = vmatprep.subr.mxu0 0.0
      %990 = vmatpush1.msra.mxu0 0.0
      %991 = vmatprep.subr.mxu0 0.0
      %992 = vmatpush1.msra.mxu0 0.0
      %993 = vmatprep.subr.mxu0 0.0
      %994 = vmatpush1.msra.mxu0 0.0
      %995 = vmatprep.subr.mxu0 0.0
      %996 = vmatpush1.msra.mxu0 0.0
      %997 = vmatprep.subr.mxu0 0.0
      %998 = vmatpush1.msra.mxu0 0.0
      %999 = vmatprep.subr.mxu0 0.0
      %1000 = vmatpush1.msra.mxu0 0.0
      %1001 = vmatprep.subr.mxu0 0.0
      %1002 = vmatpush1.msra.mxu0 0.0
      %1003 = vmatprep.subr.mxu0 0.0
      %1004 = vmatpush1.msra.mxu0 0.0
      %1005 = vmatprep.subr.mxu0 0.0
      %1006 = vmatpush1.msra.mxu0 0.0
      %1007 = vmatprep.subr.mxu0 0.0
      %1008 = vmatpush1.msra.mxu0 0.0
      %1009 = vmatprep.subr.mxu0 0.0
      %1010 = vmatpush1.msra.mxu0 0.0
      %1011 = vmatprep.subr.mxu0 0.0
      %1012 = vmatpush1.msra.mxu0 0.0
      %1013 = vmatprep.subr.mxu0 0.0
      %1014 = vmatpush1.msra.mxu0 0.0
      %1015 = vmatprep.subr.mxu0 0.0
      %1016 = vmatpush1.msra.mxu0 0.0
      %1017 = vmatprep.subr.mxu0 0.0
      %1018 = vmatpush1.msra.mxu0 0.0
      %1019 = vmatprep.subr.mxu0 0.0
      %1020 = vmatpush1.msra.mxu0 0.0
      %1021 = vmatprep.subr.mxu0 0.0
      %1022 = vmatpush1.msra.mxu0 0.0
      %1023 = vmatprep.subr.mxu0 0.0
      %1024 = vmatpush1.msra.mxu0 0.0
      %1025 = vmatprep.subr.mxu0 0.0
      %1026 = vmatpush1.msra.mxu0 0.0
      %1027 = vmatprep.subr.mxu0 0.0
      %1028 = vmatpush1.msra.mxu0 0.0
      %1029 = vmatprep.subr.mxu0 0.0
      %1030 = vmatpush1.msra.mxu0 0.0
      %1031 = vmatprep.subr.mxu0 0.0
      %1032 = vmatpush1.msra.mxu0 0.0
      %1033 = vmatprep.subr.mxu0 0.0
      %1034 = vmatpush1.msra.mxu0 0.0
      %1035 = vmatprep.subr.mxu0 0.0
      %1036 = vmatpush1.msra.mxu0 0.0
      %1037 = vmatprep.subr.mxu0 0.0
      %1038 = vmatpush1.msra.mxu0 0.0
      %1039 = vmatprep.subr.mxu0 0.0
      %1040 = vmatpush1.msra.mxu0 0.0
      %1041 = vmatprep.subr.mxu0 0.0
      %1042 = vmatpush1.msra.mxu0 0.0
      %1043 = vmatprep.subr.mxu0 0.0
      %1044 = vmatpush1.msra.mxu0 0.0
      %1045 = vmatprep.subr.mxu0 0.0
      %1046 = vmatpush1.msra.mxu0 0.0
      %1047 = vmatprep.subr.mxu0 0.0
      %1048 = vmatpush1.msra.mxu0 0.0
      %1049 = vmatprep.subr.mxu0 0.0
      %1050 = vmatpush1.msra.mxu0 0.0
      %1051 = vmatprep.mubr.f32.mxu0 0.0
      %1052 = vmatmul.mubr.f32.gmra.mrb[0].mxu0 %v985
      %v1053 = vpop.f32.mrb[0].mxu0
      %v1054 = vadd.f32 0.0, %v1053
      %v1055 = vpop.f32.mrb[0].mxu0
      %1056 = vdwg.mxu0
      %1057 = vrot.lane.b32.xlu0 %v387, 112
      %v1058 = vpop.permute.xlu0 %1057
      %1059 = vrot.lane.b32.xlu0 %v293, 112
      %v1060 = vpop.permute.xlu0 %1059
      %v1061 = vsel %vm389, %v1058, 0
      %v1063 = vsel %vm389, %v1060, 0
      %1065 = vmatprep.subr.mxu0 0.0
      %1066 = vmatpush1.xpose.msra.mxu0 %v1063
      %1067 = vmatprep.subr.mxu0 0.0
      %1068 = vmatpush1.xpose.msra.mxu0 0.0
      %1069 = vmatprep.subr.mxu0 0.0
      %1070 = vmatpush1.xpose.msra.mxu0 0.0
      %1071 = vmatprep.subr.mxu0 0.0
      %1072 = vmatpush1.xpose.msra.mxu0 0.0
      %1073 = vmatprep.subr.mxu0 0.0
      %1074 = vmatpush1.xpose.msra.mxu0 0.0
      %1075 = vmatprep.subr.mxu0 0.0
      %1076 = vmatpush1.xpose.msra.mxu0 0.0
      %1077 = vmatprep.subr.mxu0 0.0
      %1078 = vmatpush1.xpose.msra.mxu0 0.0
      %1079 = vmatprep.subr.mxu0 0.0
      %1080 = vmatpush1.xpose.msra.mxu0 0.0
      %1081 = vmatprep.subr.mxu0 0.0
      %1082 = vmatpush1.xpose.msra.mxu0 0.0
      %1083 = vmatprep.subr.mxu0 0.0
      %1084 = vmatpush1.xpose.msra.mxu0 0.0
      %1085 = vmatprep.subr.mxu0 0.0
      %1086 = vmatpush1.xpose.msra.mxu0 0.0
      %1087 = vmatprep.subr.mxu0 0.0
      %1088 = vmatpush1.xpose.msra.mxu0 0.0
      %1089 = vmatprep.subr.mxu0 0.0
      %1090 = vmatpush1.xpose.msra.mxu0 0.0
      %1091 = vmatprep.subr.mxu0 0.0
      %1092 = vmatpush1.xpose.msra.mxu0 0.0
      %1093 = vmatprep.subr.mxu0 0.0
      %1094 = vmatpush1.xpose.msra.mxu0 0.0
      %1095 = vmatprep.subr.mxu0 0.0
      %1096 = vmatpush1.xpose.msra.mxu0 0.0
      %1097 = vmatprep.subr.mxu0 0.0
      %1098 = vmatpush1.xpose.msra.mxu0 0.0
      %1099 = vmatprep.subr.mxu0 0.0
      %1100 = vmatpush1.xpose.msra.mxu0 0.0
      %1101 = vmatprep.subr.mxu0 0.0
      %1102 = vmatpush1.xpose.msra.mxu0 0.0
      %1103 = vmatprep.subr.mxu0 0.0
      %1104 = vmatpush1.xpose.msra.mxu0 0.0
      %1105 = vmatprep.subr.mxu0 0.0
      %1106 = vmatpush1.xpose.msra.mxu0 0.0
      %1107 = vmatprep.subr.mxu0 0.0
      %1108 = vmatpush1.xpose.msra.mxu0 0.0
      %1109 = vmatprep.subr.mxu0 0.0
      %1110 = vmatpush1.xpose.msra.mxu0 0.0
      %1111 = vmatprep.subr.mxu0 0.0
      %1112 = vmatpush1.xpose.msra.mxu0 0.0
      %1113 = vmatprep.subr.mxu0 0.0
      %1114 = vmatpush1.xpose.msra.mxu0 0.0
      %1115 = vmatprep.subr.mxu0 0.0
      %1116 = vmatpush1.xpose.msra.mxu0 0.0
      %1117 = vmatprep.subr.mxu0 0.0
      %1118 = vmatpush1.xpose.msra.mxu0 0.0
      %1119 = vmatprep.subr.mxu0 0.0
      %1120 = vmatpush1.xpose.msra.mxu0 0.0
      %1121 = vmatprep.subr.mxu0 0.0
      %1122 = vmatpush1.xpose.msra.mxu0 0.0
      %1123 = vmatprep.subr.mxu0 0.0
      %1124 = vmatpush1.xpose.msra.mxu0 0.0
      %1125 = vmatprep.subr.mxu0 0.0
      %1126 = vmatpush1.xpose.msra.mxu0 0.0
      %1127 = vmatprep.subr.mxu0 0.0
      %1128 = vmatpush1.xpose.msra.mxu0 0.0
      %1129 = vmatprep.mubr.f32.mxu0 0.0
      %1130 = vmatmul.mubr.f32.gmra.mrb[0].mxu0 %v1061
      %v1131 = vpop.f32.mrb[0].mxu0
      %v1132 = vadd.f32 0.0, %v1131
      %v1133 = vpop.f32.mrb[0].mxu0
      %1134 = vdwg.mxu0
      %1135 = vrot.lane.b32.xlu0 %v388, 112
      %v1136 = vpop.permute.xlu0 %1135
      %1137 = vrot.lane.b32.xlu0 %v298, 112
      %v1138 = vpop.permute.xlu0 %1137
      %v1139 = vsel %vm389, %v1136, 0
      %v1141 = vsel %vm389, %v1138, 0
      %1143 = vmatprep.subr.mxu0 0.0
      %1144 = vmatpush1.xpose.msra.mxu0 %v1141
      %1145 = vmatprep.subr.mxu0 0.0
      %1146 = vmatpush1.xpose.msra.mxu0 0.0
      %1147 = vmatprep.subr.mxu0 0.0
      %1148 = vmatpush1.xpose.msra.mxu0 0.0
      %1149 = vmatprep.subr.mxu0 0.0
      %1150 = vmatpush1.xpose.msra.mxu0 0.0
      %1151 = vmatprep.subr.mxu0 0.0
      %1152 = vmatpush1.xpose.msra.mxu0 0.0
      %1153 = vmatprep.subr.mxu0 0.0
      %1154 = vmatpush1.xpose.msra.mxu0 0.0
      %1155 = vmatprep.subr.mxu0 0.0
      %1156 = vmatpush1.xpose.msra.mxu0 0.0
      %1157 = vmatprep.subr.mxu0 0.0
      %1158 = vmatpush1.xpose.msra.mxu0 0.0
      %1159 = vmatprep.subr.mxu0 0.0
      %1160 = vmatpush1.xpose.msra.mxu0 0.0
      %1161 = vmatprep.subr.mxu0 0.0
      %1162 = vmatpush1.xpose.msra.mxu0 0.0
      %1163 = vmatprep.subr.mxu0 0.0
      %1164 = vmatpush1.xpose.msra.mxu0 0.0
      %1165 = vmatprep.subr.mxu0 0.0
      %1166 = vmatpush1.xpose.msra.mxu0 0.0
      %1167 = vmatprep.subr.mxu0 0.0
      %1168 = vmatpush1.xpose.msra.mxu0 0.0
      %1169 = vmatprep.subr.mxu0 0.0
      %1170 = vmatpush1.xpose.msra.mxu0 0.0
      %1171 = vmatprep.subr.mxu0 0.0
      %1172 = vmatpush1.xpose.msra.mxu0 0.0
      %1173 = vmatprep.subr.mxu0 0.0
      %1174 = vmatpush1.xpose.msra.mxu0 0.0
      %1175 = vmatprep.subr.mxu0 0.0
      %1176 = vmatpush1.xpose.msra.mxu0 0.0
      %1177 = vmatprep.subr.mxu0 0.0
      %1178 = vmatpush1.xpose.msra.mxu0 0.0
      %1179 = vmatprep.subr.mxu0 0.0
      %1180 = vmatpush1.xpose.msra.mxu0 0.0
      %1181 = vmatprep.subr.mxu0 0.0
      %1182 = vmatpush1.xpose.msra.mxu0 0.0
      %1183 = vmatprep.subr.mxu0 0.0
      %1184 = vmatpush1.xpose.msra.mxu0 0.0
      %1185 = vmatprep.subr.mxu0 0.0
      %1186 = vmatpush1.xpose.msra.mxu0 0.0
      %1187 = vmatprep.subr.mxu0 0.0
      %1188 = vmatpush1.xpose.msra.mxu0 0.0
      %1189 = vmatprep.subr.mxu0 0.0
      %1190 = vmatpush1.xpose.msra.mxu0 0.0
      %1191 = vmatprep.subr.mxu0 0.0
      %1192 = vmatpush1.xpose.msra.mxu0 0.0
      %1193 = vmatprep.subr.mxu0 0.0
      %1194 = vmatpush1.xpose.msra.mxu0 0.0
      %1195 = vmatprep.subr.mxu0 0.0
      %1196 = vmatpush1.xpose.msra.mxu0 0.0
      %1197 = vmatprep.subr.mxu0 0.0
      %1198 = vmatpush1.xpose.msra.mxu0 0.0
      %1199 = vmatprep.subr.mxu0 0.0
      %1200 = vmatpush1.xpose.msra.mxu0 0.0
      %1201 = vmatprep.subr.mxu0 0.0
      %1202 = vmatpush1.xpose.msra.mxu0 0.0
      %1203 = vmatprep.subr.mxu0 0.0
      %1204 = vmatpush1.xpose.msra.mxu0 0.0
      %1205 = vmatprep.subr.mxu0 0.0
      %1206 = vmatpush1.xpose.msra.mxu0 0.0
      %1207 = vmatprep.mubr.f32.mxu0 0.0
      %1208 = vmatmul.mubr.f32.gmra.mrb[0].mxu0 %v1139
      %v1209 = vpop.f32.mrb[0].mxu0
      %v1210 = vadd.f32 0.0, %v1209
      %v1211 = vpop.f32.mrb[0].mxu0
      %1212 = vdwg.mxu0
      %v1213 = vsel %vm389, %v1132, -inf
      %1214 = vmax.xlane.f32.xlu0 %v1213
      %v1215 = vpop.xlane.xlu0 %1214
      %v1216 = vsel %vm389, %v1210, -inf
      %1217 = vmax.xlane.f32.xlu0 %v1216
      %v1218 = vpop.xlane.xlu0 %1217
      %v1219 = vsub.f32 %v1132, %v1215
      %v1220 = vsub.f32 %v1210, %v1218
      %v1221 = vmul.f32 %v1219, 1.442695
      %v1222 = vpow.pop %v1221
      %v1223 = vmul.f32 %v1220, 1.442695
      %v1224 = vpow.pop %v1223
      %v1225 = vsel %vm389, %v1222, 0.0
      %1226 = vadd.xlane.f32.xlu0 %v1225
      %v1227 = vpop.xlane.xlu0 %1226
      %v1228 = vsel %vm389, %v1224, 0.0
      %1229 = vadd.xlane.f32.xlu0 %v1228
      %v1230 = vpop.xlane.xlu0 %1229
      %v1231 = vrcp.pop %v1227
      %v1232 = vmul.f32 %v1222, %v1231
      %v1233 = vrcp.pop %v1230
      %v1234 = vmul.f32 %v1224, %v1233
      %1237 = vrot.lane.b32.xlu0 %v1232, 16
      %v1238 = vpop.permute.xlu0 %1237
      %1239 = vrot.lane.b32.xlu0 %v1234, 16
      %v1240 = vpop.permute.xlu0 %1239
      %vm1243 = vcmask 195712
      %1244 = vst.msk [vmem:[#allocation13] sm:$0xff] %vm1243, %v1238
      %1245 = vst.msk [vmem:[#allocation13 + $0x8] sm:$0xff] %vm1243, %v1240
      %v1246 = vrot.slane %v1232, 7
      %1247 = vrot.lane.b32.xlu0 %v379, 112
      %v1248 = vpop.permute.xlu0 %1247
      %v1250 = vsel %vm389, %v1246, 0
      %1252 = vmatprep.subr.mxu0 0.0
      %1253 = vmatpush1.msra.mxu0 %v1248
      %1254 = vmatprep.subr.mxu0 0.0
      %1255 = vmatpush1.msra.mxu0 0.0
      %1256 = vmatprep.subr.mxu0 0.0
      %1257 = vmatpush1.msra.mxu0 0.0
      %1258 = vmatprep.subr.mxu0 0.0
      %1259 = vmatpush1.msra.mxu0 0.0
      %1260 = vmatprep.subr.mxu0 0.0
      %1261 = vmatpush1.msra.mxu0 0.0
      %1262 = vmatprep.subr.mxu0 0.0
      %1263 = vmatpush1.msra.mxu0 0.0
      %1264 = vmatprep.subr.mxu0 0.0
      %1265 = vmatpush1.msra.mxu0 0.0
      %1266 = vmatprep.subr.mxu0 0.0
      %1267 = vmatpush1.msra.mxu0 0.0
      %1268 = vmatprep.subr.mxu0 0.0
      %1269 = vmatpush1.msra.mxu0 0.0
      %1270 = vmatprep.subr.mxu0 0.0
      %1271 = vmatpush1.msra.mxu0 0.0
      %1272 = vmatprep.subr.mxu0 0.0
      %1273 = vmatpush1.msra.mxu0 0.0
      %1274 = vmatprep.subr.mxu0 0.0
      %1275 = vmatpush1.msra.mxu0 0.0
      %1276 = vmatprep.subr.mxu0 0.0
      %1277 = vmatpush1.msra.mxu0 0.0
      %1278 = vmatprep.subr.mxu0 0.0
      %1279 = vmatpush1.msra.mxu0 0.0
      %1280 = vmatprep.subr.mxu0 0.0
      %1281 = vmatpush1.msra.mxu0 0.0
      %1282 = vmatprep.subr.mxu0 0.0
      %1283 = vmatpush1.msra.mxu0 0.0
      %1284 = vmatprep.subr.mxu0 0.0
      %1285 = vmatpush1.msra.mxu0 0.0
      %1286 = vmatprep.subr.mxu0 0.0
      %1287 = vmatpush1.msra.mxu0 0.0
      %1288 = vmatprep.subr.mxu0 0.0
      %1289 = vmatpush1.msra.mxu0 0.0
      %1290 = vmatprep.subr.mxu0 0.0
      %1291 = vmatpush1.msra.mxu0 0.0
      %1292 = vmatprep.subr.mxu0 0.0
      %1293 = vmatpush1.msra.mxu0 0.0
      %1294 = vmatprep.subr.mxu0 0.0
      %1295 = vmatpush1.msra.mxu0 0.0
      %1296 = vmatprep.subr.mxu0 0.0
      %1297 = vmatpush1.msra.mxu0 0.0
      %1298 = vmatprep.subr.mxu0 0.0
      %1299 = vmatpush1.msra.mxu0 0.0
      %1300 = vmatprep.subr.mxu0 0.0
      %1301 = vmatpush1.msra.mxu0 0.0
      %1302 = vmatprep.subr.mxu0 0.0
      %1303 = vmatpush1.msra.mxu0 0.0
      %1304 = vmatprep.subr.mxu0 0.0
      %1305 = vmatpush1.msra.mxu0 0.0
      %1306 = vmatprep.subr.mxu0 0.0
      %1307 = vmatpush1.msra.mxu0 0.0
      %1308 = vmatprep.subr.mxu0 0.0
      %1309 = vmatpush1.msra.mxu0 0.0
      %1310 = vmatprep.subr.mxu0 0.0
      %1311 = vmatpush1.msra.mxu0 0.0
      %1312 = vmatprep.subr.mxu0 0.0
      %1313 = vmatpush1.msra.mxu0 0.0
      %1314 = vmatprep.subr.mxu0 0.0
      %1315 = vmatpush1.msra.mxu0 0.0
      %1316 = vmatprep.mubr.f32.mxu0 0.0
      %1317 = vmatmul.mubr.f32.gmra.mrb[0].mxu0 %v1250
      %v1318 = vpop.f32.mrb[0].mxu0
      %v1319 = vadd.f32 0.0, %v1318
      %v1320 = vpop.f32.mrb[0].mxu0
      %1321 = vdwg.mxu0
      %v1322 = vrot.slane %v1234, 7
      %1323 = vrot.lane.b32.xlu0 %v384, 112
      %v1324 = vpop.permute.xlu0 %1323
      %v1326 = vsel %vm389, %v1322, 0
      %1328 = vmatprep.subr.mxu0 0.0
      %1329 = vmatpush1.msra.mxu0 %v1324
      %1330 = vmatprep.subr.mxu0 0.0
      %1331 = vmatpush1.msra.mxu0 0.0
      %1332 = vmatprep.subr.mxu0 0.0
      %1333 = vmatpush1.msra.mxu0 0.0
      %1334 = vmatprep.subr.mxu0 0.0
      %1335 = vmatpush1.msra.mxu0 0.0
      %1336 = vmatprep.subr.mxu0 0.0
      %1337 = vmatpush1.msra.mxu0 0.0
      %1338 = vmatprep.subr.mxu0 0.0
      %1339 = vmatpush1.msra.mxu0 0.0
      %1340 = vmatprep.subr.mxu0 0.0
      %1341 = vmatpush1.msra.mxu0 0.0
      %1342 = vmatprep.subr.mxu0 0.0
      %1343 = vmatpush1.msra.mxu0 0.0
      %1344 = vmatprep.subr.mxu0 0.0
      %1345 = vmatpush1.msra.mxu0 0.0
      %1346 = vmatprep.subr.mxu0 0.0
      %1347 = vmatpush1.msra.mxu0 0.0
      %1348 = vmatprep.subr.mxu0 0.0
      %1349 = vmatpush1.msra.mxu0 0.0
      %1350 = vmatprep.subr.mxu0 0.0
      %1351 = vmatpush1.msra.mxu0 0.0
      %1352 = vmatprep.subr.mxu0 0.0
      %1353 = vmatpush1.msra.mxu0 0.0
      %1354 = vmatprep.subr.mxu0 0.0
      %1355 = vmatpush1.msra.mxu0 0.0
      %1356 = vmatprep.subr.mxu0 0.0
      %1357 = vmatpush1.msra.mxu0 0.0
      %1358 = vmatprep.subr.mxu0 0.0
      %1359 = vmatpush1.msra.mxu0 0.0
      %1360 = vmatprep.subr.mxu0 0.0
      %1361 = vmatpush1.msra.mxu0 0.0
      %1362 = vmatprep.subr.mxu0 0.0
      %1363 = vmatpush1.msra.mxu0 0.0
      %1364 = vmatprep.subr.mxu0 0.0
      %1365 = vmatpush1.msra.mxu0 0.0
      %1366 = vmatprep.subr.mxu0 0.0
      %1367 = vmatpush1.msra.mxu0 0.0
      %1368 = vmatprep.subr.mxu0 0.0
      %1369 = vmatpush1.msra.mxu0 0.0
      %1370 = vmatprep.subr.mxu0 0.0
      %1371 = vmatpush1.msra.mxu0 0.0
      %1372 = vmatprep.subr.mxu0 0.0
      %1373 = vmatpush1.msra.mxu0 0.0
      %1374 = vmatprep.subr.mxu0 0.0
      %1375 = vmatpush1.msra.mxu0 0.0
      %1376 = vmatprep.subr.mxu0 0.0
      %1377 = vmatpush1.msra.mxu0 0.0
      %1378 = vmatprep.subr.mxu0 0.0
      %1379 = vmatpush1.msra.mxu0 0.0
      %1380 = vmatprep.subr.mxu0 0.0
      %1381 = vmatpush1.msra.mxu0 0.0
      %1382 = vmatprep.subr.mxu0 0.0
      %1383 = vmatpush1.msra.mxu0 0.0
      %1384 = vmatprep.subr.mxu0 0.0
      %1385 = vmatpush1.msra.mxu0 0.0
      %1386 = vmatprep.subr.mxu0 0.0
      %1387 = vmatpush1.msra.mxu0 0.0
      %1388 = vmatprep.subr.mxu0 0.0
      %1389 = vmatpush1.msra.mxu0 0.0
      %1390 = vmatprep.subr.mxu0 0.0
      %1391 = vmatpush1.msra.mxu0 0.0
      %1392 = vmatprep.mubr.f32.mxu0 0.0
      %1393 = vmatmul.mubr.f32.gmra.mrb[0].mxu0 %v1326
      %v1394 = vpop.f32.mrb[0].mxu0
      %v1395 = vadd.f32 0.0, %v1394
      %v1396 = vpop.f32.mrb[0].mxu0
      %1397 = vdwg.mxu0
      %1398 = vrot.lane.b32.xlu0 %v387, 104
      %v1399 = vpop.permute.xlu0 %1398
      %1400 = vrot.lane.b32.xlu0 %v293, 104
      %v1401 = vpop.permute.xlu0 %1400
      %v1402 = vsel %vm389, %v1399, 0
      %v1404 = vsel %vm389, %v1401, 0
      %1406 = vmatprep.subr.mxu0 0.0
      %1407 = vmatpush1.xpose.msra.mxu0 %v1404
      %1408 = vmatprep.subr.mxu0 0.0
      %1409 = vmatpush1.xpose.msra.mxu0 0.0
      %1410 = vmatprep.subr.mxu0 0.0
      %1411 = vmatpush1.xpose.msra.mxu0 0.0
      %1412 = vmatprep.subr.mxu0 0.0
      %1413 = vmatpush1.xpose.msra.mxu0 0.0
      %1414 = vmatprep.subr.mxu0 0.0
      %1415 = vmatpush1.xpose.msra.mxu0 0.0
      %1416 = vmatprep.subr.mxu0 0.0
      %1417 = vmatpush1.xpose.msra.mxu0 0.0
      %1418 = vmatprep.subr.mxu0 0.0
      %1419 = vmatpush1.xpose.msra.mxu0 0.0
      %1420 = vmatprep.subr.mxu0 0.0
      %1421 = vmatpush1.xpose.msra.mxu0 0.0
      %1422 = vmatprep.subr.mxu0 0.0
      %1423 = vmatpush1.xpose.msra.mxu0 0.0
      %1424 = vmatprep.subr.mxu0 0.0
      %1425 = vmatpush1.xpose.msra.mxu0 0.0
      %1426 = vmatprep.subr.mxu0 0.0
      %1427 = vmatpush1.xpose.msra.mxu0 0.0
      %1428 = vmatprep.subr.mxu0 0.0
      %1429 = vmatpush1.xpose.msra.mxu0 0.0
      %1430 = vmatprep.subr.mxu0 0.0
      %1431 = vmatpush1.xpose.msra.mxu0 0.0
      %1432 = vmatprep.subr.mxu0 0.0
      %1433 = vmatpush1.xpose.msra.mxu0 0.0
      %1434 = vmatprep.subr.mxu0 0.0
      %1435 = vmatpush1.xpose.msra.mxu0 0.0
      %1436 = vmatprep.subr.mxu0 0.0
      %1437 = vmatpush1.xpose.msra.mxu0 0.0
      %1438 = vmatprep.subr.mxu0 0.0
      %1439 = vmatpush1.xpose.msra.mxu0 0.0
      %1440 = vmatprep.subr.mxu0 0.0
      %1441 = vmatpush1.xpose.msra.mxu0 0.0
      %1442 = vmatprep.subr.mxu0 0.0
      %1443 = vmatpush1.xpose.msra.mxu0 0.0
      %1444 = vmatprep.subr.mxu0 0.0
      %1445 = vmatpush1.xpose.msra.mxu0 0.0
      %1446 = vmatprep.subr.mxu0 0.0
      %1447 = vmatpush1.xpose.msra.mxu0 0.0
      %1448 = vmatprep.subr.mxu0 0.0
      %1449 = vmatpush1.xpose.msra.mxu0 0.0
      %1450 = vmatprep.subr.mxu0 0.0
      %1451 = vmatpush1.xpose.msra.mxu0 0.0
      %1452 = vmatprep.subr.mxu0 0.0
      %1453 = vmatpush1.xpose.msra.mxu0 0.0
      %1454 = vmatprep.subr.mxu0 0.0
      %1455 = vmatpush1.xpose.msra.mxu0 0.0
      %1456 = vmatprep.subr.mxu0 0.0
      %1457 = vmatpush1.xpose.msra.mxu0 0.0
      %1458 = vmatprep.subr.mxu0 0.0
      %1459 = vmatpush1.xpose.msra.mxu0 0.0
      %1460 = vmatprep.subr.mxu0 0.0
      %1461 = vmatpush1.xpose.msra.mxu0 0.0
      %1462 = vmatprep.subr.mxu0 0.0
      %1463 = vmatpush1.xpose.msra.mxu0 0.0
      %1464 = vmatprep.subr.mxu0 0.0
      %1465 = vmatpush1.xpose.msra.mxu0 0.0
      %1466 = vmatprep.subr.mxu0 0.0
      %1467 = vmatpush1.xpose.msra.mxu0 0.0
      %1468 = vmatprep.subr.mxu0 0.0
      %1469 = vmatpush1.xpose.msra.mxu0 0.0
      %1470 = vmatprep.mubr.f32.mxu0 0.0
      %1471 = vmatmul.mubr.f32.gmra.mrb[0].mxu0 %v1402
      %v1472 = vpop.f32.mrb[0].mxu0
      %v1473 = vadd.f32 0.0, %v1472
      %v1474 = vpop.f32.mrb[0].mxu0
      %1475 = vdwg.mxu0
      %1476 = vrot.lane.b32.xlu0 %v388, 104
      %v1477 = vpop.permute.xlu0 %1476
      %1478 = vrot.lane.b32.xlu0 %v298, 104
      %v1479 = vpop.permute.xlu0 %1478
      %v1480 = vsel %vm389, %v1477, 0
      %v1482 = vsel %vm389, %v1479, 0
      %1484 = vmatprep.subr.mxu0 0.0
      %1485 = vmatpush1.xpose.msra.mxu0 %v1482
      %1486 = vmatprep.subr.mxu0 0.0
      %1487 = vmatpush1.xpose.msra.mxu0 0.0
      %1488 = vmatprep.subr.mxu0 0.0
      %1489 = vmatpush1.xpose.msra.mxu0 0.0
      %1490 = vmatprep.subr.mxu0 0.0
      %1491 = vmatpush1.xpose.msra.mxu0 0.0
      %1492 = vmatprep.subr.mxu0 0.0
      %1493 = vmatpush1.xpose.msra.mxu0 0.0
      %1494 = vmatprep.subr.mxu0 0.0
      %1495 = vmatpush1.xpose.msra.mxu0 0.0
      %1496 = vmatprep.subr.mxu0 0.0
      %1497 = vmatpush1.xpose.msra.mxu0 0.0
      %1498 = vmatprep.subr.mxu0 0.0
      %1499 = vmatpush1.xpose.msra.mxu0 0.0
      %1500 = vmatprep.subr.mxu0 0.0
      %1501 = vmatpush1.xpose.msra.mxu0 0.0
      %1502 = vmatprep.subr.mxu0 0.0
      %1503 = vmatpush1.xpose.msra.mxu0 0.0
      %1504 = vmatprep.subr.mxu0 0.0
      %1505 = vmatpush1.xpose.msra.mxu0 0.0
      %1506 = vmatprep.subr.mxu0 0.0
      %1507 = vmatpush1.xpose.msra.mxu0 0.0
      %1508 = vmatprep.subr.mxu0 0.0
      %1509 = vmatpush1.xpose.msra.mxu0 0.0
      %1510 = vmatprep.subr.mxu0 0.0
      %1511 = vmatpush1.xpose.msra.mxu0 0.0
      %1512 = vmatprep.subr.mxu0 0.0
      %1513 = vmatpush1.xpose.msra.mxu0 0.0
      %1514 = vmatprep.subr.mxu0 0.0
      %1515 = vmatpush1.xpose.msra.mxu0 0.0
      %1516 = vmatprep.subr.mxu0 0.0
      %1517 = vmatpush1.xpose.msra.mxu0 0.0
      %1518 = vmatprep.subr.mxu0 0.0
      %1519 = vmatpush1.xpose.msra.mxu0 0.0
      %1520 = vmatprep.subr.mxu0 0.0
      %1521 = vmatpush1.xpose.msra.mxu0 0.0
      %1522 = vmatprep.subr.mxu0 0.0
      %1523 = vmatpush1.xpose.msra.mxu0 0.0
      %1524 = vmatprep.subr.mxu0 0.0
      %1525 = vmatpush1.xpose.msra.mxu0 0.0
      %1526 = vmatprep.subr.mxu0 0.0
      %1527 = vmatpush1.xpose.msra.mxu0 0.0
      %1528 = vmatprep.subr.mxu0 0.0
      %1529 = vmatpush1.xpose.msra.mxu0 0.0
      %1530 = vmatprep.subr.mxu0 0.0
      %1531 = vmatpush1.xpose.msra.mxu0 0.0
      %1532 = vmatprep.subr.mxu0 0.0
      %1533 = vmatpush1.xpose.msra.mxu0 0.0
      %1534 = vmatprep.subr.mxu0 0.0
      %1535 = vmatpush1.xpose.msra.mxu0 0.0
      %1536 = vmatprep.subr.mxu0 0.0
      %1537 = vmatpush1.xpose.msra.mxu0 0.0
      %1538 = vmatprep.subr.mxu0 0.0
      %1539 = vmatpush1.xpose.msra.mxu0 0.0
      %1540 = vmatprep.subr.mxu0 0.0
      %1541 = vmatpush1.xpose.msra.mxu0 0.0
      %1542 = vmatprep.subr.mxu0 0.0
      %1543 = vmatpush1.xpose.msra.mxu0 0.0
      %1544 = vmatprep.subr.mxu0 0.0
      %1545 = vmatpush1.xpose.msra.mxu0 0.0
      %1546 = vmatprep.subr.mxu0 0.0
      %1547 = vmatpush1.xpose.msra.mxu0 0.0
      %1548 = vmatprep.mubr.f32.mxu0 0.0
      %1549 = vmatmul.mubr.f32.gmra.mrb[0].mxu0 %v1480
      %v1550 = vpop.f32.mrb[0].mxu0
      %v1551 = vadd.f32 0.0, %v1550
      %v1552 = vpop.f32.mrb[0].mxu0
      %1553 = vdwg.mxu0
      %v1554 = vsel %vm389, %v1473, -inf
      %1555 = vmax.xlane.f32.xlu0 %v1554
      %v1556 = vpop.xlane.xlu0 %1555
      %v1557 = vsel %vm389, %v1551, -inf
      %1558 = vmax.xlane.f32.xlu0 %v1557
      %v1559 = vpop.xlane.xlu0 %1558
      %v1560 = vsub.f32 %v1473, %v1556
      %v1561 = vsub.f32 %v1551, %v1559
      %v1562 = vmul.f32 %v1560, 1.442695
      %v1563 = vpow.pop %v1562
      %v1564 = vmul.f32 %v1561, 1.442695
      %v1565 = vpow.pop %v1564
      %v1566 = vsel %vm389, %v1563, 0.0
      %1567 = vadd.xlane.f32.xlu0 %v1566
      %v1568 = vpop.xlane.xlu0 %1567
      %v1569 = vsel %vm389, %v1565, 0.0
      %1570 = vadd.xlane.f32.xlu0 %v1569
      %v1571 = vpop.xlane.xlu0 %1570
      %v1572 = vrcp.pop %v1568
      %v1573 = vmul.f32 %v1563, %v1572
      %v1574 = vrcp.pop %v1571
      %v1575 = vmul.f32 %v1565, %v1574
      %1578 = vrot.lane.b32.xlu0 %v1573, 24
      %v1579 = vpop.permute.xlu0 %1578
      %1580 = vrot.lane.b32.xlu0 %v1575, 24
      %v1581 = vpop.permute.xlu0 %1580
      %vm1584 = vcmask 261312
      %1585 = vst.msk [vmem:[#allocation13] sm:$0xff] %vm1584, %v1579
      %1586 = vst.msk [vmem:[#allocation13 + $0x8] sm:$0xff] %vm1584, %v1581
      %v1587 = vrot.slane %v1573, 7
      %1588 = vrot.lane.b32.xlu0 %v379, 104
      %v1589 = vpop.permute.xlu0 %1588
      %v1591 = vsel %vm389, %v1587, 0
      %1593 = vmatprep.subr.mxu0 0.0
      %1594 = vmatpush1.msra.mxu0 %v1589
      %1595 = vmatprep.subr.mxu0 0.0
      %1596 = vmatpush1.msra.mxu0 0.0
      %1597 = vmatprep.subr.mxu0 0.0
      %1598 = vmatpush1.msra.mxu0 0.0
      %1599 = vmatprep.subr.mxu0 0.0
      %1600 = vmatpush1.msra.mxu0 0.0
      %1601 = vmatprep.subr.mxu0 0.0
      %1602 = vmatpush1.msra.mxu0 0.0
      %1603 = vmatprep.subr.mxu0 0.0
      %1604 = vmatpush1.msra.mxu0 0.0
      %1605 = vmatprep.subr.mxu0 0.0
      %1606 = vmatpush1.msra.mxu0 0.0
      %1607 = vmatprep.subr.mxu0 0.0
      %1608 = vmatpush1.msra.mxu0 0.0
      %1609 = vmatprep.subr.mxu0 0.0
      %1610 = vmatpush1.msra.mxu0 0.0
      %1611 = vmatprep.subr.mxu0 0.0
      %1612 = vmatpush1.msra.mxu0 0.0
      %1613 = vmatprep.subr.mxu0 0.0
      %1614 = vmatpush1.msra.mxu0 0.0
      %1615 = vmatprep.subr.mxu0 0.0
      %1616 = vmatpush1.msra.mxu0 0.0
      %1617 = vmatprep.subr.mxu0 0.0
      %1618 = vmatpush1.msra.mxu0 0.0
      %1619 = vmatprep.subr.mxu0 0.0
      %1620 = vmatpush1.msra.mxu0 0.0
      %1621 = vmatprep.subr.mxu0 0.0
      %1622 = vmatpush1.msra.mxu0 0.0
      %1623 = vmatprep.subr.mxu0 0.0
      %1624 = vmatpush1.msra.mxu0 0.0
      %1625 = vmatprep.subr.mxu0 0.0
      %1626 = vmatpush1.msra.mxu0 0.0
      %1627 = vmatprep.subr.mxu0 0.0
      %1628 = vmatpush1.msra.mxu0 0.0
      %1629 = vmatprep.subr.mxu0 0.0
      %1630 = vmatpush1.msra.mxu0 0.0
      %1631 = vmatprep.subr.mxu0 0.0
      %1632 = vmatpush1.msra.mxu0 0.0
      %1633 = vmatprep.subr.mxu0 0.0
      %1634 = vmatpush1.msra.mxu0 0.0
      %1635 = vmatprep.subr.mxu0 0.0
      %1636 = vmatpush1.msra.mxu0 0.0
      %1637 = vmatprep.subr.mxu0 0.0
      %1638 = vmatpush1.msra.mxu0 0.0
      %1639 = vmatprep.subr.mxu0 0.0
      %1640 = vmatpush1.msra.mxu0 0.0
      %1641 = vmatprep.subr.mxu0 0.0
      %1642 = vmatpush1.msra.mxu0 0.0
      %1643 = vmatprep.subr.mxu0 0.0
      %1644 = vmatpush1.msra.mxu0 0.0
      %1645 = vmatprep.subr.mxu0 0.0
      %1646 = vmatpush1.msra.mxu0 0.0
      %1647 = vmatprep.subr.mxu0 0.0
      %1648 = vmatpush1.msra.mxu0 0.0
      %1649 = vmatprep.subr.mxu0 0.0
      %1650 = vmatpush1.msra.mxu0 0.0
      %1651 = vmatprep.subr.mxu0 0.0
      %1652 = vmatpush1.msra.mxu0 0.0
      %1653 = vmatprep.subr.mxu0 0.0
      %1654 = vmatpush1.msra.mxu0 0.0
      %1655 = vmatprep.subr.mxu0 0.0
      %1656 = vmatpush1.msra.mxu0 0.0
      %1657 = vmatprep.mubr.f32.mxu0 0.0
      %1658 = vmatmul.mubr.f32.gmra.mrb[0].mxu0 %v1591
      %v1659 = vpop.f32.mrb[0].mxu0
      %v1660 = vadd.f32 0.0, %v1659
      %v1661 = vpop.f32.mrb[0].mxu0
      %1662 = vdwg.mxu0
      %v1663 = vrot.slane %v1575, 7
      %1664 = vrot.lane.b32.xlu0 %v384, 104
      %v1665 = vpop.permute.xlu0 %1664
      %v1667 = vsel %vm389, %v1663, 0
      %1669 = vmatprep.subr.mxu0 0.0
      %1670 = vmatpush1.msra.mxu0 %v1665
      %1671 = vmatprep.subr.mxu0 0.0
      %1672 = vmatpush1.msra.mxu0 0.0
      %1673 = vmatprep.subr.mxu0 0.0
      %1674 = vmatpush1.msra.mxu0 0.0
      %1675 = vmatprep.subr.mxu0 0.0
      %1676 = vmatpush1.msra.mxu0 0.0
      %1677 = vmatprep.subr.mxu0 0.0
      %1678 = vmatpush1.msra.mxu0 0.0
      %1679 = vmatprep.subr.mxu0 0.0
      %1680 = vmatpush1.msra.mxu0 0.0
      %1681 = vmatprep.subr.mxu0 0.0
      %1682 = vmatpush1.msra.mxu0 0.0
      %1683 = vmatprep.subr.mxu0 0.0
      %1684 = vmatpush1.msra.mxu0 0.0
      %1685 = vmatprep.subr.mxu0 0.0
      %1686 = vmatpush1.msra.mxu0 0.0
      %1687 = vmatprep.subr.mxu0 0.0
      %1688 = vmatpush1.msra.mxu0 0.0
      %1689 = vmatprep.subr.mxu0 0.0
      %1690 = vmatpush1.msra.mxu0 0.0
      %1691 = vmatprep.subr.mxu0 0.0
      %1692 = vmatpush1.msra.mxu0 0.0
      %1693 = vmatprep.subr.mxu0 0.0
      %1694 = vmatpush1.msra.mxu0 0.0
      %1695 = vmatprep.subr.mxu0 0.0
      %1696 = vmatpush1.msra.mxu0 0.0
      %1697 = vmatprep.subr.mxu0 0.0
      %1698 = vmatpush1.msra.mxu0 0.0
      %1699 = vmatprep.subr.mxu0 0.0
      %1700 = vmatpush1.msra.mxu0 0.0
      %1701 = vmatprep.subr.mxu0 0.0
      %1702 = vmatpush1.msra.mxu0 0.0
      %1703 = vmatprep.subr.mxu0 0.0
      %1704 = vmatpush1.msra.mxu0 0.0
      %1705 = vmatprep.subr.mxu0 0.0
      %1706 = vmatpush1.msra.mxu0 0.0
      %1707 = vmatprep.subr.mxu0 0.0
      %1708 = vmatpush1.msra.mxu0 0.0
      %1709 = vmatprep.subr.mxu0 0.0
      %1710 = vmatpush1.msra.mxu0 0.0
      %1711 = vmatprep.subr.mxu0 0.0
      %1712 = vmatpush1.msra.mxu0 0.0
      %1713 = vmatprep.subr.mxu0 0.0
      %1714 = vmatpush1.msra.mxu0 0.0
      %1715 = vmatprep.subr.mxu0 0.0
      %1716 = vmatpush1.msra.mxu0 0.0
      %1717 = vmatprep.subr.mxu0 0.0
      %1718 = vmatpush1.msra.mxu0 0.0
      %1719 = vmatprep.subr.mxu0 0.0
      %1720 = vmatpush1.msra.mxu0 0.0
      %1721 = vmatprep.subr.mxu0 0.0
      %1722 = vmatpush1.msra.mxu0 0.0
      %1723 = vmatprep.subr.mxu0 0.0
      %1724 = vmatpush1.msra.mxu0 0.0
      %1725 = vmatprep.subr.mxu0 0.0
      %1726 = vmatpush1.msra.mxu0 0.0
      %1727 = vmatprep.subr.mxu0 0.0
      %1728 = vmatpush1.msra.mxu0 0.0
      %1729 = vmatprep.subr.mxu0 0.0
      %1730 = vmatpush1.msra.mxu0 0.0
      %1731 = vmatprep.subr.mxu0 0.0
      %1732 = vmatpush1.msra.mxu0 0.0
      %1733 = vmatprep.mubr.f32.mxu0 0.0
      %1734 = vmatmul.mubr.f32.gmra.mrb[0].mxu0 %v1667
      %v1735 = vpop.f32.mrb[0].mxu0
      %v1736 = vadd.f32 0.0, %v1735
      %v1737 = vpop.f32.mrb[0].mxu0
      %1738 = vdwg.mxu0
      %1741 = vrot.lane.b32.xlu0 %v977, 8
      %v1742 = vpop.permute.xlu0 %1741
      %1743 = vrot.lane.b32.xlu0 %v1054, 8
      %v1744 = vpop.permute.xlu0 %1743
      %1749 = vrot.lane.b32.xlu0 %v1319, 16
      %v1750 = vpop.permute.xlu0 %1749
      %1751 = vrot.lane.b32.xlu0 %v1395, 16
      %v1752 = vpop.permute.xlu0 %1751
      %1757 = vrot.lane.b32.xlu0 %v1660, 24
      %v1758 = vpop.permute.xlu0 %1757
      %1759 = vrot.lane.b32.xlu0 %v1736, 24
      %v1760 = vpop.permute.xlu0 %1759
      %v1763 = vsel %vm389, %v637, %v1742
      %v1764 = vsel %vm389, %v711, %v1744
      %vm1765 = vcmask 130048
      %v1766 = vsel %vm1765, %v1763, %v1750
      %v1767 = vsel %vm1765, %v1764, %v1752
      %vm1768 = vcmask 195584
      %v1769 = vsel %vm1768, %v1766, %v1758
      %v1770 = vsel %vm1768, %v1767, %v1760
      %v1771 = vld [vmem:[#allocation11] sm:$0xff]
      %v1772 = vld [vmem:[#allocation11 + $0x8] sm:$0xff]
      %v1773 = vld [vmem:[#allocation11 + $0x10] sm:$0xff]
      %v1774 = vld [vmem:[#allocation11 + $0x18] sm:$0xff]
      %v1775 = vld [vmem:[%s8] sm:$0x1]
      %v1777 = vlaneseq
      %v1778 = vshrl.u32 %v1777, 7
      %v1779 = vsub.s32 0, %v1778
      %v1780 = vrot.slane %v1775, %v1779
      %v1784 = vrot.slane %v1770, 7
      %vm1785 = vcmask 1041409
      %v1786 = vsel %vm1785, %v1784, %v1769
      %v1787 = vsel %vm133, %v1786, 0
      %1789 = vmatprep.subr.mxu0 0.0
      %1790 = vmatpush1.msra.mxu0 %v1771
      %1791 = vmatprep.subr.mxu0 0.0
      %1792 = vmatpush1.msra.mxu0 %v1772
      %1793 = vmatprep.subr.mxu0 0.0
      %1794 = vmatpush1.msra.mxu0 %v1773
      %1795 = vmatprep.subr.mxu0 0.0
      %1796 = vmatpush1.msra.mxu0 %v1774
      %1797 = vmatprep.subr.mxu0 0.0
      %1798 = vmatpush1.msra.mxu0 0.0
      %1799 = vmatprep.subr.mxu0 0.0
      %1800 = vmatpush1.msra.mxu0 0.0
      %1801 = vmatprep.subr.mxu0 0.0
      %1802 = vmatpush1.msra.mxu0 0.0
      %1803 = vmatprep.subr.mxu0 0.0
      %1804 = vmatpush1.msra.mxu0 0.0
      %1805 = vmatprep.subr.mxu0 0.0
      %1806 = vmatpush1.msra.mxu0 0.0
      %1807 = vmatprep.subr.mxu0 0.0
      %1808 = vmatpush1.msra.mxu0 0.0
      %1809 = vmatprep.subr.mxu0 0.0
      %1810 = vmatpush1.msra.mxu0 0.0
      %1811 = vmatprep.subr.mxu0 0.0
      %1812 = vmatpush1.msra.mxu0 0.0
      %1813 = vmatprep.subr.mxu0 0.0
      %1814 = vmatpush1.msra.mxu0 0.0
      %1815 = vmatprep.subr.mxu0 0.0
      %1816 = vmatpush1.msra.mxu0 0.0
      %1817 = vmatprep.subr.mxu0 0.0
      %1818 = vmatpush1.msra.mxu0 0.0
      %1819 = vmatprep.subr.mxu0 0.0
      %1820 = vmatpush1.msra.mxu0 0.0
      %1821 = vmatprep.subr.mxu0 0.0
      %1822 = vmatpush1.msra.mxu0 0.0
      %1823 = vmatprep.subr.mxu0 0.0
      %1824 = vmatpush1.msra.mxu0 0.0
      %1825 = vmatprep.subr.mxu0 0.0
      %1826 = vmatpush1.msra.mxu0 0.0
      %1827 = vmatprep.subr.mxu0 0.0
      %1828 = vmatpush1.msra.mxu0 0.0
      %1829 = vmatprep.subr.mxu0 0.0
      %1830 = vmatpush1.msra.mxu0 0.0
      %1831 = vmatprep.subr.mxu0 0.0
      %1832 = vmatpush1.msra.mxu0 0.0
      %1833 = vmatprep.subr.mxu0 0.0
      %1834 = vmatpush1.msra.mxu0 0.0
      %1835 = vmatprep.subr.mxu0 0.0
      %1836 = vmatpush1.msra.mxu0 0.0
      %1837 = vmatprep.subr.mxu0 0.0
      %1838 = vmatpush1.msra.mxu0 0.0
      %1839 = vmatprep.subr.mxu0 0.0
      %1840 = vmatpush1.msra.mxu0 0.0
      %1841 = vmatprep.subr.mxu0 0.0
      %1842 = vmatpush1.msra.mxu0 0.0
      %1843 = vmatprep.subr.mxu0 0.0
      %1844 = vmatpush1.msra.mxu0 0.0
      %1845 = vmatprep.subr.mxu0 0.0
      %1846 = vmatpush1.msra.mxu0 0.0
      %1847 = vmatprep.subr.mxu0 0.0
      %1848 = vmatpush1.msra.mxu0 0.0
      %1849 = vmatprep.subr.mxu0 0.0
      %1850 = vmatpush1.msra.mxu0 0.0
      %1851 = vmatprep.subr.mxu0 0.0
      %1852 = vmatpush1.msra.mxu0 0.0
      %1853 = vmatprep.mubr.f32.mxu0 0.0
      %1854 = vmatmul.mubr.f32.gmra.mrb[0].mxu0 %v1787
      %v1855 = vpop.f32.mrb[0].mxu0
      %v1856 = vadd.f32 %v1780, %v1855
      %v1857 = vpop.f32.mrb[0].mxu0
      %1858 = vdwg.mxu0
      %v1859 = vrot.slane %v120, 7
      %v1860 = vrot.slane %v121, 6
      %v1861 = vsel %vm1785, %v1860, %v1859
      %v1863 = vadd.f32 %v1856, %v1861
      %vm1864 = vcmask 254976
      %v1865 = vsel %vm1864, %v1863, 0.0
      %1866 = vadd.xlane.f32.xlu0 %v1865
      %v1867 = vpop.xlane.xlu0 %1866
      %v1868 = vrcp.pop 32.0
      %v1869 = vmul.f32 %v1867, %v1868
      %v1870 = vsub.f32 %v1863, %v1869
      %v1871 = vmul.f32 %v1870, %v1870
      %v1872 = vsel %vm1864, %v1871, 0.0
      %1873 = vadd.xlane.f32.xlu0 %v1872
      %v1874 = vpop.xlane.xlu0 %1873
      %v1875 = vmul.f32 %v1874, %v1868
      %v1876 = vadd.f32 %v1875, 1e-05
      %v1877 = vrsqrt.pop %v1876
      %v1878 = vmul.f32 %v1870, %v1877
      %v1879 = vld [vmem:[%s9] sm:$0x1]
      %v1881 = vlaneseq
      %v1882 = vshrl.u32 %v1881, 7
      %v1883 = vsub.s32 0, %v1882
      %v1884 = vrot.slane %v1879, %v1883
      %v1886 = vmul.f32 %v1878, %v1884
      %v1887 = vld [vmem:[%s10] sm:$0x1]
      %v1889 = vlaneseq
      %v1890 = vshrl.u32 %v1889, 7
      %v1891 = vsub.s32 0, %v1890
      %v1892 = vrot.slane %v1887, %v1891
      %v1894 = vadd.f32 %v1886, %v1892
      %1895 = vst.msk [vmem:[#allocation2] sm:$0x3] %vm1864, %v1894
    $region77: #{tpu_custom_call.1} parent=1 // pred_fallthru
      _
    %v1896 = vld [vmem:[#allocation2] sm:$0x3]
    %v1897 = vld [vmem:[%s11] sm:$0xff]
    %v1898 = vld [vmem:[%s11 + $0x8] sm:$0xff]
    %v1899 = vld [vmem:[%s11 + $0x10] sm:$0xff]
    %v1900 = vld [vmem:[%s11 + $0x18] sm:$0xff]
    %v1901 = vld [vmem:[%s12] sm:$0x1]
    %v1903 = vlaneseq
    %v1904 = vshrl.u32 %v1903, 7
    %v1905 = vsub.s32 0, %v1904
    %v1906 = vrot.slane %v1901, %v1905
    %vm1908 = vcmask 261120
    %v1910 = vsel %vm1908, %v1896, 0
    %1912 = vmatprep.subr.mxu0 0.0
    %1913 = vmatpush1.msra.mxu0 %v1897
    %1914 = vmatprep.subr.mxu0 0.0
    %1915 = vmatpush1.msra.mxu0 %v1898
    %1916 = vmatprep.subr.mxu0 0.0
    %1917 = vmatpush1.msra.mxu0 %v1899
    %1918 = vmatprep.subr.mxu0 0.0
    %1919 = vmatpush1.msra.mxu0 %v1900
    %1920 = vmatprep.subr.mxu0 0.0
    %1921 = vmatpush1.msra.mxu0 0.0
    %1922 = vmatprep.subr.mxu0 0.0
    %1923 = vmatpush1.msra.mxu0 0.0
    %1924 = vmatprep.subr.mxu0 0.0
    %1925 = vmatpush1.msra.mxu0 0.0
    %1926 = vmatprep.subr.mxu0 0.0
    %1927 = vmatpush1.msra.mxu0 0.0
    %1928 = vmatprep.subr.mxu0 0.0
    %1929 = vmatpush1.msra.mxu0 0.0
    %1930 = vmatprep.subr.mxu0 0.0
    %1931 = vmatpush1.msra.mxu0 0.0
    %1932 = vmatprep.subr.mxu0 0.0
    %1933 = vmatpush1.msra.mxu0 0.0
    %1934 = vmatprep.subr.mxu0 0.0
    %1935 = vmatpush1.msra.mxu0 0.0
    %1936 = vmatprep.subr.mxu0 0.0
    %1937 = vmatpush1.msra.mxu0 0.0
    %1938 = vmatprep.subr.mxu0 0.0
    %1939 = vmatpush1.msra.mxu0 0.0
    %1940 = vmatprep.subr.mxu0 0.0
    %1941 = vmatpush1.msra.mxu0 0.0
    %1942 = vmatprep.subr.mxu0 0.0
    %1943 = vmatpush1.msra.mxu0 0.0
    %1944 = vmatprep.subr.mxu0 0.0
    %1945 = vmatpush1.msra.mxu0 0.0
    %1946 = vmatprep.subr.mxu0 0.0
    %1947 = vmatpush1.msra.mxu0 0.0
    %1948 = vmatprep.subr.mxu0 0.0
    %1949 = vmatpush1.msra.mxu0 0.0
    %1950 = vmatprep.subr.mxu0 0.0
    %1951 = vmatpush1.msra.mxu0 0.0
    %1952 = vmatprep.subr.mxu0 0.0
    %1953 = vmatpush1.msra.mxu0 0.0
    %1954 = vmatprep.subr.mxu0 0.0
    %1955 = vmatpush1.msra.mxu0 0.0
    %1956 = vmatprep.subr.mxu0 0.0
    %1957 = vmatpush1.msra.mxu0 0.0
    %1958 = vmatprep.subr.mxu0 0.0
    %1959 = vmatpush1.msra.mxu0 0.0
    %1960 = vmatprep.subr.mxu0 0.0
    %1961 = vmatpush1.msra.mxu0 0.0
    %1962 = vmatprep.subr.mxu0 0.0
    %1963 = vmatpush1.msra.mxu0 0.0
    %1964 = vmatprep.subr.mxu0 0.0
    %1965 = vmatpush1.msra.mxu0 0.0
    %1966 = vmatprep.subr.mxu0 0.0
    %1967 = vmatpush1.msra.mxu0 0.0
    %1968 = vmatprep.subr.mxu0 0.0
    %1969 = vmatpush1.msra.mxu0 0.0
    %1970 = vmatprep.subr.mxu0 0.0
    %1971 = vmatpush1.msra.mxu0 0.0
    %1972 = vmatprep.subr.mxu0 0.0
    %1973 = vmatpush1.msra.mxu0 0.0
    %1974 = vmatprep.subr.mxu0 0.0
    %1975 = vmatpush1.msra.mxu0 0.0
    %1976 = vmatprep.mubr.f32.mxu0 0.0
    %1977 = vmatmul.mubr.f32.gmra.mrb[0].mxu0 %v1910
    %v1978 = vpop.f32.mrb[0].mxu0
    %v1979 = vadd.f32 %v1906, %v1978
    %v1980 = vpop.f32.mrb[0].mxu0
    %1981 = vdwg.mxu0
    %1982 = vst [vmem:[#allocation12] sm:$0x3] %v1979
    // Predicated region
    $region78: #{tpu_custom_call.1} parent=1 // pred_check
      _
    $region79: #{tpu_custom_call.1} parent=1 // pred_check_branch
      %1984 = sbr.rel (0) target = $region81
    $region80: #{tpu_custom_call.1} parent=1 // pred_region
      %s1986 = ssub.s32 32, 32
      %1987 = vsyncadd [#allocation5], %s1986
      %s1989 = sshll.u32 [#allocation12], 4
      %s1990 = int_to_ptr.vmem [resolvable:$true] %s1989
      %1992 = dma.vmem_to_hbm [thread:$0]  %s1990, 32, %s13, [#allocation5]
    $region81: #{tpu_custom_call.1} parent=1 // pred_fallthru
      _
    // Predicated region
    $region82: #{tpu_custom_call.1} parent=1 // pred_check
      _
    $region83: #{tpu_custom_call.1} parent=1 // pred_check_branch
      %1994 = sbr.rel (0) target = $region85
    $region84: #{tpu_custom_call.1} parent=1 // pred_region
      %s1996 = ssub.s32 256, 256
      %1997 = vsyncadd [#allocation14], %s1996
      %s1998 = sshll.u32 [#allocation13], 4
      %s1999 = int_to_ptr.vmem [resolvable:$true] %s1998
      %2004 = dma.vmem_to_hbm [thread:$0]  %s1999, 256, %s14, [#allocation14], 128, 128, 8
    $region85: #{tpu_custom_call.1} parent=1 // pred_fallthru
      _
    // Predicated region
    $region86: #{tpu_custom_call.1} parent=1 // pred_check
      _
    $region87: #{tpu_custom_call.1} parent=1 // pred_check_branch
      %2006 = sbr.rel (0) target = $region89
    $region88: #{tpu_custom_call.1} parent=1 // pred_region
      %2007 = dma.done [#allocation5], 32
    $region89: #{tpu_custom_call.1} parent=1 // pred_fallthru
      _
    // Predicated region
    $region90: #{tpu_custom_call.1} parent=1 // pred_check
      _
    $region91: #{tpu_custom_call.1} parent=1 // pred_check_branch
      %2009 = sbr.rel (0) target = $region93
    $region92: #{tpu_custom_call.1} parent=1 // pred_region
      %2010 = dma.done [#allocation14], 256
    $region93: #{tpu_custom_call.1} parent=1 // pred_fallthru
      _
    %2011 = vsyncpa [#allocation4], 1
    %2012 = vsyncpa [#allocation7], 1
    %2013 = vsyncpa [#allocation10], 1
    %2014 = vsyncpa [#allocation5], 1
    %2015 = vsyncpa [#allocation14], 1

</llo_original>
